<compile_context>
chip_gen: v5e
topology: v5e:2x2
jax: 0.10.0
libtpu: 0.0.40
codegen_flags: <defaults>
</compile_context>

<pallas_src>
import functools
import math

import jax
import jax.numpy as jnp
from jax.experimental import pallas as pl
from jax.experimental.pallas import tpu as pltpu

C_PAD = 128   # padded conv-channel / class lane width (lane-dense stores)
K_PAD = 32    # padded im2col contraction dim (3*3*3 = 27 -> 32)


# ----------------------------------------------------------------------------
# Fused kernel: conv(matmul)+bias+ReLU -> 4x4 maxpool -> flatten -> fc+bias
# ----------------------------------------------------------------------------
def _fused_kernel(patch_ref, wc_ref, bc_ref, wf_ref, bf_ref, out_ref,
                  *, bt, hw, pool):
    cdim = wc_ref.shape[1]          # 128 (padded channels)
    hp = hw // pool                 # pooled spatial size (4)

    # conv as matmul on the MXU; f32 accumulate; bias + ReLU epilogue.
    conv = jnp.dot(patch_ref[...], wc_ref[...],
                   preferred_element_type=jnp.float32)
    conv = jnp.maximum(conv + bc_ref[...], 0.0)          # (bt*hw*hw, cdim)

    # MaxPool2d(pool): rows are ordered (b, oh, ow) with ow fastest.
    # stage 1: pool over the oh offset (di)
    c1 = conv.reshape(bt * hp, pool, hw, cdim)           # [b*hp+i, di, ow, c]
    m1 = jnp.max(c1, axis=1)                             # (bt*hp, hw, cdim)
    # stage 2: pool over the ow offset (dj)
    c2 = m1.reshape(bt * hp * hp, pool, cdim)            # [b*hp^2+i*hp+j, dj, c]
    m2 = jnp.max(c2, axis=1)                             # (bt*hp*hp, cdim)

    # channels-last flatten (i, j, c) — fc weight was pre-permuted to match.
    flat = m2.reshape(bt, hp * hp * cdim)                # (bt, 2048)
    fc = jnp.dot(flat, wf_ref[...],
                 preferred_element_type=jnp.float32) + bf_ref[...]
    out_ref[...] = fc.astype(out_ref.dtype)              # (bt, 128), lane-dense


# ----------------------------------------------------------------------------
# im2col glue (pure indexing, no MACs). Rows (b, oh, ow); cols (c, kh, kw)
# matching PyTorch weight.reshape(Cout, -1).
# ----------------------------------------------------------------------------
def im2col_same(x, k, pad):
    B, C, H, W = x.shape
    xp = jnp.pad(x, ((0, 0), (0, 0), (pad, pad), (pad, pad)))
    cols = []
    for kh in range(k):
        for kw in range(k):
            cols.append(xp[:, :, kh:kh + H, kw:kw + W])  # (B, C, H, W)
    p = jnp.stack(cols, axis=2)                          # (B, C, k*k, H, W)
    p = p.reshape(B, C * k * k, H, W)                    # col = c*k*k + kh*k + kw
    p = p.transpose(0, 2, 3, 1).reshape(B * H * W, C * k * k)
    return p


# ----------------------------------------------------------------------------
# One-time parameter preprocessing (hoisted out of the forward pass).
# ----------------------------------------------------------------------------
def preprocess_params(params):
    wc = params["w_conv"]        # (8, 3, 3, 3)   OIHW
    bc = params["b_conv"]        # (8,)
    wl = params["w_fc"]          # (5, 128)  col index = c*16 + h*4 + w (NCHW flatten)
    bl = params["b_fc"]          # (5,)

    cout, cin, kh, kw = wc.shape
    kdim = cin * kh * kw
    wc_m = jnp.zeros((K_PAD, C_PAD), jnp.float32)
    wc_m = wc_m.at[:kdim, :cout].set(wc.reshape(cout, kdim).T)
    bc_m = jnp.zeros((1, C_PAD), jnp.float32).at[0, :cout].set(bc)

    nclass, feat = wl.shape
    hp = int(round(math.sqrt(feat // cout)))             # 4
    wl_r = wl.reshape(nclass, cout, hp, hp)               # (n, c, h, w)
    wl_p = jnp.transpose(wl_r, (2, 3, 1, 0))              # (h, w, c, n)
    wf_m = jnp.zeros((hp, hp, C_PAD, C_PAD), jnp.float32)
    wf_m = wf_m.at[:, :, :cout, :nclass].set(wl_p).reshape(hp * hp * C_PAD, C_PAD)
    bf_m = jnp.zeros((1, C_PAD), jnp.float32).at[0, :nclass].set(bl)

    return {"wc": wc_m, "bc": bc_m, "wf": wf_m, "bf": bf_m,
            "n_class": nclass, "hp": hp}


# ----------------------------------------------------------------------------
# Forward pass
# ----------------------------------------------------------------------------
def simple_image_model_forward(pp, x):
    # x: (B, 3, 16, 16) float32 NCHW
    B, C, H, W = x.shape
    pool = 4
    hw = H
    hp = hw // pool

    block_b = 8 if B >= 8 else B                     # images per grid step
    num_blocks = -(-B // block_b)
    B_pad = num_blocks * block_b
    if B_pad != B:
        x = jnp.pad(x, ((0, B_pad - B), (0, 0), (0, 0), (0, 0)))

    patches = im2col_same(x, 3, 1)                   # (B_pad*hw*hw, 27)
    kdim = patches.shape[1]
    patches = jnp.pad(patches, ((0, 0), (0, K_PAD - kdim)))

    rows_blk = block_b * hw * hw
    flops = 2 * B_pad * hw * hw * K_PAD * C_PAD + 2 * B_pad * hp * hp * C_PAD * C_PAD
    bytes_accessed = 4 * (patches.size + pp["wc"].size + pp["bc"].size
                          + pp["wf"].size + pp["bf"].size + B_pad * C_PAD)

    out = pl.pallas_call(
        functools.partial(_fused_kernel, bt=block_b, hw=hw, pool=pool),
        out_shape=jax.ShapeDtypeStruct((B_pad, C_PAD), jnp.float32),
        grid=(num_blocks,),
        in_specs=[
            pl.BlockSpec((rows_blk, K_PAD), lambda i: (i, 0)),       # patches
            pl.BlockSpec((K_PAD, C_PAD), lambda i: (0, 0)),          # conv weight
            pl.BlockSpec((1, C_PAD), lambda i: (0, 0)),              # conv bias
            pl.BlockSpec((hp * hp * C_PAD, C_PAD), lambda i: (0, 0)),  # fc weight
            pl.BlockSpec((1, C_PAD), lambda i: (0, 0)),              # fc bias
        ],
        out_specs=pl.BlockSpec((block_b, C_PAD), lambda i: (i, 0)),
        compiler_params=pltpu.CompilerParams(
            dimension_semantics=("parallel",)),
        cost_estimate=pl.CostEstimate(flops=flops, transcendentals=0,
                                      bytes_accessed=bytes_accessed),
    )(patches, pp["wc"], pp["bc"], pp["wf"], pp["bf"])

    return out[:B, :pp["n_class"]]                   # slice padding at the very end


# ----------------------------------------------------------------------------
# Deterministic PyTorch-style uniform init
# ----------------------------------------------------------------------------
def init_params(key):
    def uniform(k, shape, fan_in):
        bound = 1.0 / math.sqrt(fan_in)
        return jax.random.uniform(k, shape, jnp.float32, -bound, bound)

    ks = jax.random.split(key, 4)
    return {
        "w_conv": uniform(ks[0], (8, 3, 3, 3), 3 * 3 * 3),
        "b_conv": uniform(ks[1], (8,), 3 * 3 * 3),
        "w_fc": uniform(ks[2], (5, 4 * 4 * 8), 4 * 4 * 8),
        "b_fc": uniform(ks[3], (5,), 4 * 4 * 8),
    }


# ----------------------------------------------------------------------------
# Pure-JAX reference (sanity check against the Pallas path)
# ----------------------------------------------------------------------------
def reference_forward(params, x):
    y = jax.lax.conv_general_dilated(
        x, params["w_conv"], window_strides=(1, 1), padding=((1, 1), (1, 1)),
        dimension_numbers=("NCHW", "OIHW", "NCHW"))
    y = jax.nn.relu(y + params["b_conv"][None, :, None, None])
    B, Cc, H, W = y.shape
    y = y.reshape(B, Cc, H // 4, 4, W // 4, 4).max(axis=(3, 5))   # MaxPool2d(4)
    y = y.reshape(B, -1)                                          # NCHW flatten
    return y @ params["w_fc"].T + params["b_fc"]


if __name__ == "__main__":
    key = jax.random.PRNGKey(0)
    k_param, k_x = jax.random.split(key)
    params = init_params(k_param)
    pp = preprocess_params(params)

    # Linear(4*4*8) after MaxPool2d(4) implies 16x16 spatial input, 3 channels.
    x = jax.random.normal(k_x, (2, 3, 16, 16), jnp.float32)

    out = jax.block_until_ready(simple_image_model_forward(pp, x))
    assert out.shape == (2, 5), out.shape

    ref = jax.block_until_ready(reference_forward(params, x))
    assert jnp.allclose(out, ref, atol=1e-4, rtol=1e-4), (
        jnp.max(jnp.abs(out - ref)))

    print("KERNEL_OK")
</pallas_src>

<mosaic_0001>
module attributes {stable_mosaic.version = 11 : i64} {
  func.func @_fused_kernel(%arg0: i32, %arg1: memref<512x32xf32, #tpu.memory_space<vmem>>, %arg2: memref<32x128xf32, #tpu.memory_space<vmem>>, %arg3: memref<1x128xf32, #tpu.memory_space<vmem>>, %arg4: memref<2048x128xf32, #tpu.memory_space<vmem>>, %arg5: memref<1x128xf32, #tpu.memory_space<vmem>>, %arg6: memref<2x128xf32, #tpu.memory_space<vmem>>) attributes {dimension_semantics = [#tpu.dimension_semantics<parallel>], iteration_bounds = array<i64: 1>, scalar_prefetch = 0 : i64, scratch_operands = 0 : i64, tpu.core_type = #tpu.core_type<tc>, window_params = [{transform_indices = @transform_0, window_bounds = array<i64: 512, 32>}, {pipeline_mode = #tpu.pipeline_mode<synchronous>, transform_indices = @transform_1, window_bounds = array<i64: 32, 128>}, {pipeline_mode = #tpu.pipeline_mode<synchronous>, transform_indices = @transform_2, window_bounds = array<i64: 1, 128>}, {pipeline_mode = #tpu.pipeline_mode<synchronous>, transform_indices = @transform_3, window_bounds = array<i64: 2048, 128>}, {pipeline_mode = #tpu.pipeline_mode<synchronous>, transform_indices = @transform_4, window_bounds = array<i64: 1, 128>}, {transform_indices = @transform_5, window_bounds = array<i64: 2, 128>}]} {
    %c0 = arith.constant 0 : index
    %c0_0 = arith.constant 0 : index
    %0 = vector.load %arg1[%c0, %c0_0] : memref<512x32xf32, #tpu.memory_space<vmem>>, vector<512x32xf32>
    %c0_1 = arith.constant 0 : index
    %c0_2 = arith.constant 0 : index
    %1 = vector.load %arg2[%c0_1, %c0_2] : memref<32x128xf32, #tpu.memory_space<vmem>>, vector<32x128xf32>
    %cst = arith.constant dense<0.000000e+00> : vector<512x128xf32>
    %2 = tpu.matmul %0, %1, %cst {dimension_numbers = #tpu.dot_dimension_numbers<[1], [0], [0], [1], [0, 0, 1, 1], [], []>} : vector<512x32xf32>, vector<32x128xf32>, vector<512x128xf32> -> vector<512x128xf32>
    %c0_3 = arith.constant 0 : index
    %c0_4 = arith.constant 0 : index
    %3 = vector.load %arg3[%c0_3, %c0_4] : memref<1x128xf32, #tpu.memory_space<vmem>>, vector<1x128xf32>
    %4 = vector.broadcast %3 : vector<1x128xf32> to vector<512x128xf32>
    %5 = arith.addf %2, %4 : vector<512x128xf32>
    %cst_5 = arith.constant 0.000000e+00 : f32
    %6 = vector.broadcast %cst_5 : f32 to vector<512x128xf32>
    %7 = arith.maximumf %5, %6 : vector<512x128xf32>
    %8 = vector.shape_cast %7 : vector<512x128xf32> to vector<8x4x16x128xf32>
    %cst_6 = arith.constant dense<0xFF800000> : vector<8x16x128xf32>
    %9 = vector.multi_reduction <maximumf>, %8, %cst_6 [1] : vector<8x4x16x128xf32> to vector<8x16x128xf32>
    %10 = vector.shape_cast %9 : vector<8x16x128xf32> to vector<32x4x128xf32>
    %cst_7 = arith.constant dense<0xFF800000> : vector<32x128xf32>
    %11 = vector.multi_reduction <maximumf>, %10, %cst_7 [1] : vector<32x4x128xf32> to vector<32x128xf32>
    %12 = vector.shape_cast %11 : vector<32x128xf32> to vector<2x2048xf32>
    %c0_8 = arith.constant 0 : index
    %c0_9 = arith.constant 0 : index
    %13 = vector.load %arg4[%c0_8, %c0_9] : memref<2048x128xf32, #tpu.memory_space<vmem>>, vector<2048x128xf32>
    %cst_10 = arith.constant dense<0.000000e+00> : vector<2x128xf32>
    %14 = tpu.matmul %12, %13, %cst_10 {dimension_numbers = #tpu.dot_dimension_numbers<[1], [0], [0], [1], [0, 0, 1, 1], [], []>} : vector<2x2048xf32>, vector<2048x128xf32>, vector<2x128xf32> -> vector<2x128xf32>
    %c0_11 = arith.constant 0 : index
    %c0_12 = arith.constant 0 : index
    %15 = vector.load %arg5[%c0_11, %c0_12] : memref<1x128xf32, #tpu.memory_space<vmem>>, vector<1x128xf32>
    %16 = vector.broadcast %15 : vector<1x128xf32> to vector<2x128xf32>
    %17 = arith.addf %14, %16 : vector<2x128xf32>
    %c0_13 = arith.constant 0 : index
    %c0_14 = arith.constant 0 : index
    %18 = vector.load %arg6[%c0_13, %c0_14] : memref<2x128xf32, #tpu.memory_space<vmem>>, vector<2x128xf32>
    tpu.vector_store %arg6[%c0_13, %c0_14], %17 {strides = array<i32>} : memref<2x128xf32, #tpu.memory_space<vmem>>, vector<2x128xf32>,
    return
  }
  func.func @transform_0(%arg0: i32) -> (i32, i32) {
    %c0_i32 = arith.constant 0 : i32
    %c0_i32_0 = arith.constant 0 : i32
    return %arg0, %c0_i32 : i32, i32
  }
  func.func @transform_1(%arg0: i32) -> (i32, i32) {
    %c0_i32 = arith.constant 0 : i32
    %c0_i32_0 = arith.constant 0 : i32
    %c0_i32_1 = arith.constant 0 : i32
    return %c0_i32, %c0_i32_0 : i32, i32
  }
  func.func @transform_2(%arg0: i32) -> (i32, i32) {
    %c0_i32 = arith.constant 0 : i32
    %c0_i32_0 = arith.constant 0 : i32
    %c0_i32_1 = arith.constant 0 : i32
    return %c0_i32, %c0_i32_0 : i32, i32
  }
  func.func @transform_3(%arg0: i32) -> (i32, i32) {
    %c0_i32 = arith.constant 0 : i32
    %c0_i32_0 = arith.constant 0 : i32
    %c0_i32_1 = arith.constant 0 : i32
    return %c0_i32, %c0_i32_0 : i32, i32
  }
  func.func @transform_4(%arg0: i32) -> (i32, i32) {
    %c0_i32 = arith.constant 0 : i32
    %c0_i32_0 = arith.constant 0 : i32
    %c0_i32_1 = arith.constant 0 : i32
    return %c0_i32, %c0_i32_0 : i32, i32
  }
  func.func @transform_5(%arg0: i32) -> (i32, i32) {
    %c0_i32 = arith.constant 0 : i32
    %c0_i32_0 = arith.constant 0 : i32
    return %arg0, %c0_i32 : i32, i32
  }
}

</mosaic_0001>

<llo_original>
// kernel: tpu_custom_call.1
$region0: #{tpu_custom_call.1}
  #allocation0 [shape = 'u32[]', space=smem, size = 0x4, offset = 0x4, fixed_abs, tag = 'smem constant byte address 0x4 - core index']
  #allocation1 [shape = 'u32[72,128]{1,0:T(1,128)}', space=vmem, size = 0x9000, scoped, tag = 'internal scratch']
  %s0 = inlined_call_operand.vmem [shape: f32[512,32], index: 0, kind: input, shape index: {}]
  %s1 = inlined_call_operand.vmem [shape: f32[32,128], index: 1, kind: input, shape index: {}]
  %s2 = inlined_call_operand.vmem [shape: f32[1,128], index: 2, kind: input, shape index: {}]
  %s3 = inlined_call_operand.hbm [shape: f32[2048,128], index: 3, kind: input, shape index: {}]
  %s4 = inlined_call_operand.vmem [shape: f32[1,128], index: 4, kind: input, shape index: {}]
  %s5 = inlined_call_operand.hbm [shape: f32[2,128], index: 5, kind: output, shape index: {}]
  %s6 = sld [smem:[#allocation0]]
  $region34: #{tpu_custom_call.1} parent=0
    _
  %s8 = ssub.s32 1, %s6
  %s9 = scalar_select 0, %s8, %s6
  $region1: #{tpu_custom_call.1} parent=0
    #allocation2 [shape = 'u8[1048576]{0}', space=vmem, size = 0x100000, scoped, tag = 'input window, operand 3, single buffered']
    #allocation3 [shape = 's32[1]{0}', space=sflag, size = 0x4, scoped, tag = 'scoped memory for tpu_custom_call.1']
    #allocation4 [shape = 's32[1]{0}', space=sflag, size = 0x4, scoped, tag = 'scoped memory for tpu_custom_call.1']
    #allocation5 [shape = 'u8[1024]{0}', space=vmem, size = 0x400, scoped, tag = 'output window, operand 0, single buffered']
    %10 = vsyncpa [#allocation3], 0
    %11 = vsyncpa [#allocation4], 0
    // Predicated region
    $region2: #{tpu_custom_call.1} parent=1 // pred_check
      _
    $region3: #{tpu_custom_call.1} parent=1 // pred_check_branch
      %13 = sbr.rel (0) target = $region5
    $region4: #{tpu_custom_call.1} parent=1 // pred_region
      _
    $region5: #{tpu_custom_call.1} parent=1 // pred_fallthru
      _
    // Predicated region
    $region6: #{tpu_custom_call.1} parent=1 // pred_check
      _
    $region7: #{tpu_custom_call.1} parent=1 // pred_check_branch
      %15 = sbr.rel (0) target = $region9
    $region8: #{tpu_custom_call.1} parent=1 // pred_region
      _
    $region9: #{tpu_custom_call.1} parent=1 // pred_fallthru
      _
    // Predicated region
    $region10: #{tpu_custom_call.1} parent=1 // pred_check
      _
    $region11: #{tpu_custom_call.1} parent=1 // pred_check_branch
      %17 = sbr.rel (0) target = $region13
    $region12: #{tpu_custom_call.1} parent=1 // pred_region
      _
    $region13: #{tpu_custom_call.1} parent=1 // pred_fallthru
      _
    // Predicated region
    $region14: #{tpu_custom_call.1} parent=1 // pred_check
      _
    $region15: #{tpu_custom_call.1} parent=1 // pred_check_branch
      %19 = sbr.rel (0) target = $region17
    $region16: #{tpu_custom_call.1} parent=1 // pred_region
      %21 = vsyncadd [#allocation3], 0
      %s22 = sshll.u32 %s3, 4
      %s23 = int_to_ptr.hbm [resolvable:$true] %s22
      %s24 = sshll.u32 [#allocation2], 4
      %s25 = int_to_ptr.vmem [resolvable:$true] %s24
      %30 = dma.hbm_to_vmem [thread:$0]  %s23, 32768, %s25, [#allocation3], 128, 128, 8
    $region17: #{tpu_custom_call.1} parent=1 // pred_fallthru
      _
    // Predicated region
    $region18: #{tpu_custom_call.1} parent=1 // pred_check
      _
    $region19: #{tpu_custom_call.1} parent=1 // pred_check_branch
      %32 = sbr.rel (0) target = $region21
    $region20: #{tpu_custom_call.1} parent=1 // pred_region
      _
    $region21: #{tpu_custom_call.1} parent=1 // pred_fallthru
      _
    // Predicated region
    $region22: #{tpu_custom_call.1} parent=1 // pred_check
      _
    $region23: #{tpu_custom_call.1} parent=1 // pred_check_branch
      %34 = sbr.rel (0) target = $region25
    $region24: #{tpu_custom_call.1} parent=1 // pred_region
      %36 = dma.done [#allocation3], 32768
    $region25: #{tpu_custom_call.1} parent=1 // pred_fallthru
      _
    %v37 = vld [vmem:[%s0] sm:$0xff]
    %v38 = vld [vmem:[%s0 + $0x8] sm:$0xff]
    %v39 = vld [vmem:[%s0 + $0x10] sm:$0xff]
    %v40 = vld [vmem:[%s0 + $0x18] sm:$0xff]
    %v41 = vld [vmem:[%s0 + $0x20] sm:$0xff]
    %v42 = vld [vmem:[%s0 + $0x28] sm:$0xff]
    %v43 = vld [vmem:[%s0 + $0x30] sm:$0xff]
    %v44 = vld [vmem:[%s0 + $0x38] sm:$0xff]
    %v45 = vld [vmem:[%s0 + $0x40] sm:$0xff]
    %v46 = vld [vmem:[%s0 + $0x48] sm:$0xff]
    %v47 = vld [vmem:[%s0 + $0x50] sm:$0xff]
    %v48 = vld [vmem:[%s0 + $0x58] sm:$0xff]
    %v49 = vld [vmem:[%s0 + $0x60] sm:$0xff]
    %v50 = vld [vmem:[%s0 + $0x68] sm:$0xff]
    %v51 = vld [vmem:[%s0 + $0x70] sm:$0xff]
    %v52 = vld [vmem:[%s0 + $0x78] sm:$0xff]
    %v53 = vld [vmem:[%s0 + $0x80] sm:$0xff]
    %v54 = vld [vmem:[%s0 + $0x88] sm:$0xff]
    %v55 = vld [vmem:[%s0 + $0x90] sm:$0xff]
    %v56 = vld [vmem:[%s0 + $0x98] sm:$0xff]
    %v57 = vld [vmem:[%s0 + $0xa0] sm:$0xff]
    %v58 = vld [vmem:[%s0 + $0xa8] sm:$0xff]
    %v59 = vld [vmem:[%s0 + $0xb0] sm:$0xff]
    %v60 = vld [vmem:[%s0 + $0xb8] sm:$0xff]
    %v61 = vld [vmem:[%s0 + $0xc0] sm:$0xff]
    %v62 = vld [vmem:[%s0 + $0xc8] sm:$0xff]
    %v63 = vld [vmem:[%s0 + $0xd0] sm:$0xff]
    %v64 = vld [vmem:[%s0 + $0xd8] sm:$0xff]
    %v65 = vld [vmem:[%s0 + $0xe0] sm:$0xff]
    %v66 = vld [vmem:[%s0 + $0xe8] sm:$0xff]
    %v67 = vld [vmem:[%s0 + $0xf0] sm:$0xff]
    %v68 = vld [vmem:[%s0 + $0xf8] sm:$0xff]
    %v69 = vld [vmem:[%s0 + $0x100] sm:$0xff]
    %v70 = vld [vmem:[%s0 + $0x108] sm:$0xff]
    %v71 = vld [vmem:[%s0 + $0x110] sm:$0xff]
    %v72 = vld [vmem:[%s0 + $0x118] sm:$0xff]
    %v73 = vld [vmem:[%s0 + $0x120] sm:$0xff]
    %v74 = vld [vmem:[%s0 + $0x128] sm:$0xff]
    %v75 = vld [vmem:[%s0 + $0x130] sm:$0xff]
    %v76 = vld [vmem:[%s0 + $0x138] sm:$0xff]
    %v77 = vld [vmem:[%s0 + $0x140] sm:$0xff]
    %v78 = vld [vmem:[%s0 + $0x148] sm:$0xff]
    %v79 = vld [vmem:[%s0 + $0x150] sm:$0xff]
    %v80 = vld [vmem:[%s0 + $0x158] sm:$0xff]
    %v81 = vld [vmem:[%s0 + $0x160] sm:$0xff]
    %v82 = vld [vmem:[%s0 + $0x168] sm:$0xff]
    %v83 = vld [vmem:[%s0 + $0x170] sm:$0xff]
    %v84 = vld [vmem:[%s0 + $0x178] sm:$0xff]
    %v85 = vld [vmem:[%s0 + $0x180] sm:$0xff]
    %v86 = vld [vmem:[%s0 + $0x188] sm:$0xff]
    %v87 = vld [vmem:[%s0 + $0x190] sm:$0xff]
    %v88 = vld [vmem:[%s0 + $0x198] sm:$0xff]
    %v89 = vld [vmem:[%s0 + $0x1a0] sm:$0xff]
    %v90 = vld [vmem:[%s0 + $0x1a8] sm:$0xff]
    %v91 = vld [vmem:[%s0 + $0x1b0] sm:$0xff]
    %v92 = vld [vmem:[%s0 + $0x1b8] sm:$0xff]
    %v93 = vld [vmem:[%s0 + $0x1c0] sm:$0xff]
    %v94 = vld [vmem:[%s0 + $0x1c8] sm:$0xff]
    %v95 = vld [vmem:[%s0 + $0x1d0] sm:$0xff]
    %v96 = vld [vmem:[%s0 + $0x1d8] sm:$0xff]
    %v97 = vld [vmem:[%s0 + $0x1e0] sm:$0xff]
    %v98 = vld [vmem:[%s0 + $0x1e8] sm:$0xff]
    %v99 = vld [vmem:[%s0 + $0x1f0] sm:$0xff]
    %v100 = vld [vmem:[%s0 + $0x1f8] sm:$0xff]
    %v101 = vld [vmem:[%s1] sm:$0xff]
    %v102 = vld [vmem:[%s1 + $0x8] sm:$0xff]
    %v103 = vld [vmem:[%s1 + $0x10] sm:$0xff]
    %v104 = vld [vmem:[%s1 + $0x18] sm:$0xff]
    %v105 = vld [vmem:[%s2] sm:$0x1]
    %v107 = vperm.slane %v105, 0
    %vm109 = vcmask 261120
    %v111 = vsel %vm109, %v37, 0
    %v114 = vsel %vm109, %v38, 0
    %v117 = vsel %vm109, %v39, 0
    %v120 = vsel %vm109, %v40, 0
    %v123 = vsel %vm109, %v41, 0
    %v126 = vsel %vm109, %v42, 0
    %v129 = vsel %vm109, %v43, 0
    %v132 = vsel %vm109, %v44, 0
    %v135 = vsel %vm109, %v45, 0
    %v138 = vsel %vm109, %v46, 0
    %v141 = vsel %vm109, %v47, 0
    %v144 = vsel %vm109, %v48, 0
    %v147 = vsel %vm109, %v49, 0
    %v150 = vsel %vm109, %v50, 0
    %v153 = vsel %vm109, %v51, 0
    %v156 = vsel %vm109, %v52, 0
    %v159 = vsel %vm109, %v53, 0
    %v162 = vsel %vm109, %v54, 0
    %v165 = vsel %vm109, %v55, 0
    %v168 = vsel %vm109, %v56, 0
    %v171 = vsel %vm109, %v57, 0
    %v174 = vsel %vm109, %v58, 0
    %v177 = vsel %vm109, %v59, 0
    %v180 = vsel %vm109, %v60, 0
    %v183 = vsel %vm109, %v61, 0
    %v186 = vsel %vm109, %v62, 0
    %v189 = vsel %vm109, %v63, 0
    %v192 = vsel %vm109, %v64, 0
    %v195 = vsel %vm109, %v65, 0
    %v198 = vsel %vm109, %v66, 0
    %v201 = vsel %vm109, %v67, 0
    %v204 = vsel %vm109, %v68, 0
    %v207 = vsel %vm109, %v69, 0
    %v210 = vsel %vm109, %v70, 0
    %v213 = vsel %vm109, %v71, 0
    %v216 = vsel %vm109, %v72, 0
    %v219 = vsel %vm109, %v73, 0
    %v222 = vsel %vm109, %v74, 0
    %v225 = vsel %vm109, %v75, 0
    %v228 = vsel %vm109, %v76, 0
    %v231 = vsel %vm109, %v77, 0
    %v234 = vsel %vm109, %v78, 0
    %v237 = vsel %vm109, %v79, 0
    %v240 = vsel %vm109, %v80, 0
    %v243 = vsel %vm109, %v81, 0
    %v246 = vsel %vm109, %v82, 0
    %v249 = vsel %vm109, %v83, 0
    %v252 = vsel %vm109, %v84, 0
    %v255 = vsel %vm109, %v85, 0
    %v258 = vsel %vm109, %v86, 0
    %v261 = vsel %vm109, %v87, 0
    %v264 = vsel %vm109, %v88, 0
    %v267 = vsel %vm109, %v89, 0
    %v270 = vsel %vm109, %v90, 0
    %v273 = vsel %vm109, %v91, 0
    %v276 = vsel %vm109, %v92, 0
    %v279 = vsel %vm109, %v93, 0
    %v282 = vsel %vm109, %v94, 0
    %v285 = vsel %vm109, %v95, 0
    %v288 = vsel %vm109, %v96, 0
    %v291 = vsel %vm109, %v97, 0
    %v294 = vsel %vm109, %v98, 0
    %v297 = vsel %vm109, %v99, 0
    %v300 = vsel %vm109, %v100, 0
    %302 = vmatpush.msra.mxu0 0.0
    %303 = vmatpush.msra.mxu0 0.0
    %304 = vmatpush.msra.mxu0 0.0
    %305 = vmatpush.msra.mxu0 0.0
    %306 = vmatpush.msra.mxu0 0.0
    %307 = vmatpush.msra.mxu0 0.0
    %308 = vmatpush.msra.mxu0 0.0
    %309 = vmatpush.msra.mxu0 0.0
    %310 = vmatpush.msra.mxu0 0.0
    %311 = vmatpush.msra.mxu0 0.0
    %312 = vmatpush.msra.mxu0 0.0
    %313 = vmatpush.msra.mxu0 0.0
    %314 = vmatpush.msra.mxu0 %v104
    %315 = vmatpush.msra.mxu0 %v103
    %316 = vmatpush.msra.mxu0 %v102
    %317 = vmatpush.msra.mxu0 %v101
    %318 = vmatmul.f32.gmra.mxu0 %v111
    %v319 = vpop.f32.mrf.mxu0
    %v320 = vadd.f32 %v107, %v319
    %321 = vmatmul.f32.gmra.mxu0 %v114
    %v322 = vpop.f32.mrf.mxu0
    %v323 = vadd.f32 %v107, %v322
    %324 = vmatmul.f32.gmra.mxu0 %v117
    %v325 = vpop.f32.mrf.mxu0
    %v326 = vadd.f32 %v107, %v325
    %327 = vmatmul.f32.gmra.mxu0 %v120
    %v328 = vpop.f32.mrf.mxu0
    %v329 = vadd.f32 %v107, %v328
    %330 = vmatmul.f32.gmra.mxu0 %v123
    %v331 = vpop.f32.mrf.mxu0
    %v332 = vadd.f32 %v107, %v331
    %333 = vmatmul.f32.gmra.mxu0 %v126
    %v334 = vpop.f32.mrf.mxu0
    %v335 = vadd.f32 %v107, %v334
    %336 = vmatmul.f32.gmra.mxu0 %v129
    %v337 = vpop.f32.mrf.mxu0
    %v338 = vadd.f32 %v107, %v337
    %339 = vmatmul.f32.gmra.mxu0 %v132
    %v340 = vpop.f32.mrf.mxu0
    %v341 = vadd.f32 %v107, %v340
    %342 = vmatmul.f32.gmra.mxu0 %v135
    %v343 = vpop.f32.mrf.mxu0
    %v344 = vadd.f32 %v107, %v343
    %345 = vmatmul.f32.gmra.mxu0 %v138
    %v346 = vpop.f32.mrf.mxu0
    %v347 = vadd.f32 %v107, %v346
    %348 = vmatmul.f32.gmra.mxu0 %v141
    %v349 = vpop.f32.mrf.mxu0
    %v350 = vadd.f32 %v107, %v349
    %351 = vmatmul.f32.gmra.mxu0 %v144
    %v352 = vpop.f32.mrf.mxu0
    %v353 = vadd.f32 %v107, %v352
    %354 = vmatmul.f32.gmra.mxu0 %v147
    %v355 = vpop.f32.mrf.mxu0
    %v356 = vadd.f32 %v107, %v355
    %357 = vmatmul.f32.gmra.mxu0 %v150
    %v358 = vpop.f32.mrf.mxu0
    %v359 = vadd.f32 %v107, %v358
    %360 = vmatmul.f32.gmra.mxu0 %v153
    %v361 = vpop.f32.mrf.mxu0
    %v362 = vadd.f32 %v107, %v361
    %363 = vmatmul.f32.gmra.mxu0 %v156
    %v364 = vpop.f32.mrf.mxu0
    %v365 = vadd.f32 %v107, %v364
    %366 = vmatmul.f32.gmra.mxu0 %v159
    %v367 = vpop.f32.mrf.mxu0
    %v368 = vadd.f32 %v107, %v367
    %369 = vmatmul.f32.gmra.mxu0 %v162
    %v370 = vpop.f32.mrf.mxu0
    %v371 = vadd.f32 %v107, %v370
    %372 = vmatmul.f32.gmra.mxu0 %v165
    %v373 = vpop.f32.mrf.mxu0
    %v374 = vadd.f32 %v107, %v373
    %375 = vmatmul.f32.gmra.mxu0 %v168
    %v376 = vpop.f32.mrf.mxu0
    %v377 = vadd.f32 %v107, %v376
    %378 = vmatmul.f32.gmra.mxu0 %v171
    %v379 = vpop.f32.mrf.mxu0
    %v380 = vadd.f32 %v107, %v379
    %381 = vmatmul.f32.gmra.mxu0 %v174
    %v382 = vpop.f32.mrf.mxu0
    %v383 = vadd.f32 %v107, %v382
    %384 = vmatmul.f32.gmra.mxu0 %v177
    %v385 = vpop.f32.mrf.mxu0
    %v386 = vadd.f32 %v107, %v385
    %387 = vmatmul.f32.gmra.mxu0 %v180
    %v388 = vpop.f32.mrf.mxu0
    %v389 = vadd.f32 %v107, %v388
    %390 = vmatmul.f32.gmra.mxu0 %v183
    %v391 = vpop.f32.mrf.mxu0
    %v392 = vadd.f32 %v107, %v391
    %393 = vmatmul.f32.gmra.mxu0 %v186
    %v394 = vpop.f32.mrf.mxu0
    %v395 = vadd.f32 %v107, %v394
    %396 = vmatmul.f32.gmra.mxu0 %v189
    %v397 = vpop.f32.mrf.mxu0
    %v398 = vadd.f32 %v107, %v397
    %399 = vmatmul.f32.gmra.mxu0 %v192
    %v400 = vpop.f32.mrf.mxu0
    %v401 = vadd.f32 %v107, %v400
    %402 = vmatmul.f32.gmra.mxu0 %v195
    %v403 = vpop.f32.mrf.mxu0
    %v404 = vadd.f32 %v107, %v403
    %405 = vmatmul.f32.gmra.mxu0 %v198
    %v406 = vpop.f32.mrf.mxu0
    %v407 = vadd.f32 %v107, %v406
    %408 = vmatmul.f32.gmra.mxu0 %v201
    %v409 = vpop.f32.mrf.mxu0
    %v410 = vadd.f32 %v107, %v409
    %411 = vmatmul.f32.gmra.mxu0 %v204
    %v412 = vpop.f32.mrf.mxu0
    %v413 = vadd.f32 %v107, %v412
    %414 = vmatmul.f32.gmra.mxu0 %v207
    %v415 = vpop.f32.mrf.mxu0
    %v416 = vadd.f32 %v107, %v415
    %417 = vmatmul.f32.gmra.mxu0 %v210
    %v418 = vpop.f32.mrf.mxu0
    %v419 = vadd.f32 %v107, %v418
    %420 = vmatmul.f32.gmra.mxu0 %v213
    %v421 = vpop.f32.mrf.mxu0
    %v422 = vadd.f32 %v107, %v421
    %423 = vmatmul.f32.gmra.mxu0 %v216
    %v424 = vpop.f32.mrf.mxu0
    %v425 = vadd.f32 %v107, %v424
    %426 = vmatmul.f32.gmra.mxu0 %v219
    %v427 = vpop.f32.mrf.mxu0
    %v428 = vadd.f32 %v107, %v427
    %429 = vmatmul.f32.gmra.mxu0 %v222
    %v430 = vpop.f32.mrf.mxu0
    %v431 = vadd.f32 %v107, %v430
    %432 = vmatmul.f32.gmra.mxu0 %v225
    %v433 = vpop.f32.mrf.mxu0
    %v434 = vadd.f32 %v107, %v433
    %435 = vmatmul.f32.gmra.mxu0 %v228
    %v436 = vpop.f32.mrf.mxu0
    %v437 = vadd.f32 %v107, %v436
    %438 = vmatmul.f32.gmra.mxu0 %v231
    %v439 = vpop.f32.mrf.mxu0
    %v440 = vadd.f32 %v107, %v439
    %441 = vmatmul.f32.gmra.mxu0 %v234
    %v442 = vpop.f32.mrf.mxu0
    %v443 = vadd.f32 %v107, %v442
    %444 = vmatmul.f32.gmra.mxu0 %v237
    %v445 = vpop.f32.mrf.mxu0
    %v446 = vadd.f32 %v107, %v445
    %447 = vmatmul.f32.gmra.mxu0 %v240
    %v448 = vpop.f32.mrf.mxu0
    %v449 = vadd.f32 %v107, %v448
    %450 = vmatmul.f32.gmra.mxu0 %v243
    %v451 = vpop.f32.mrf.mxu0
    %v452 = vadd.f32 %v107, %v451
    %453 = vmatmul.f32.gmra.mxu0 %v246
    %v454 = vpop.f32.mrf.mxu0
    %v455 = vadd.f32 %v107, %v454
    %456 = vmatmul.f32.gmra.mxu0 %v249
    %v457 = vpop.f32.mrf.mxu0
    %v458 = vadd.f32 %v107, %v457
    %459 = vmatmul.f32.gmra.mxu0 %v252
    %v460 = vpop.f32.mrf.mxu0
    %v461 = vadd.f32 %v107, %v460
    %462 = vmatmul.f32.gmra.mxu0 %v255
    %v463 = vpop.f32.mrf.mxu0
    %v464 = vadd.f32 %v107, %v463
    %465 = vmatmul.f32.gmra.mxu0 %v258
    %v466 = vpop.f32.mrf.mxu0
    %v467 = vadd.f32 %v107, %v466
    %468 = vmatmul.f32.gmra.mxu0 %v261
    %v469 = vpop.f32.mrf.mxu0
    %v470 = vadd.f32 %v107, %v469
    %471 = vmatmul.f32.gmra.mxu0 %v264
    %v472 = vpop.f32.mrf.mxu0
    %v473 = vadd.f32 %v107, %v472
    %474 = vmatmul.f32.gmra.mxu0 %v267
    %v475 = vpop.f32.mrf.mxu0
    %v476 = vadd.f32 %v107, %v475
    %477 = vmatmul.f32.gmra.mxu0 %v270
    %v478 = vpop.f32.mrf.mxu0
    %v479 = vadd.f32 %v107, %v478
    %480 = vmatmul.f32.gmra.mxu0 %v273
    %v481 = vpop.f32.mrf.mxu0
    %v482 = vadd.f32 %v107, %v481
    %483 = vmatmul.f32.gmra.mxu0 %v276
    %v484 = vpop.f32.mrf.mxu0
    %v485 = vadd.f32 %v107, %v484
    %486 = vmatmul.f32.gmra.mxu0 %v279
    %v487 = vpop.f32.mrf.mxu0
    %v488 = vadd.f32 %v107, %v487
    %489 = vmatmul.f32.gmra.mxu0 %v282
    %v490 = vpop.f32.mrf.mxu0
    %v491 = vadd.f32 %v107, %v490
    %492 = vmatmul.f32.gmra.mxu0 %v285
    %v493 = vpop.f32.mrf.mxu0
    %v494 = vadd.f32 %v107, %v493
    %495 = vmatmul.f32.gmra.mxu0 %v288
    %v496 = vpop.f32.mrf.mxu0
    %v497 = vadd.f32 %v107, %v496
    %498 = vmatmul.f32.gmra.mxu0 %v291
    %v499 = vpop.f32.mrf.mxu0
    %v500 = vadd.f32 %v107, %v499
    %501 = vmatmul.f32.gmra.mxu0 %v294
    %v502 = vpop.f32.mrf.mxu0
    %v503 = vadd.f32 %v107, %v502
    %504 = vmatmul.f32.gmra.mxu0 %v297
    %v505 = vpop.f32.mrf.mxu0
    %v506 = vadd.f32 %v107, %v505
    %507 = vmatmul.f32.gmra.mxu0 %v300
    %v508 = vpop.f32.mrf.mxu0
    %v509 = vadd.f32 %v107, %v508
    %510 = vdwg.mxu0
    %v511 = vmax.f32 %v320, 0.0
    %v512 = vmax.f32 %v323, 0.0
    %v513 = vmax.f32 %v326, 0.0
    %v514 = vmax.f32 %v329, 0.0
    %v515 = vmax.f32 %v332, 0.0
    %v516 = vmax.f32 %v335, 0.0
    %v517 = vmax.f32 %v338, 0.0
    %v518 = vmax.f32 %v341, 0.0
    %v519 = vmax.f32 %v344, 0.0
    %v520 = vmax.f32 %v347, 0.0
    %v521 = vmax.f32 %v350, 0.0
    %v522 = vmax.f32 %v353, 0.0
    %v523 = vmax.f32 %v356, 0.0
    %v524 = vmax.f32 %v359, 0.0
    %v525 = vmax.f32 %v362, 0.0
    %v526 = vmax.f32 %v365, 0.0
    %v527 = vmax.f32 %v368, 0.0
    %v528 = vmax.f32 %v371, 0.0
    %v529 = vmax.f32 %v374, 0.0
    %v530 = vmax.f32 %v377, 0.0
    %v531 = vmax.f32 %v380, 0.0
    %v532 = vmax.f32 %v383, 0.0
    %v533 = vmax.f32 %v386, 0.0
    %v534 = vmax.f32 %v389, 0.0
    %v535 = vmax.f32 %v392, 0.0
    %v536 = vmax.f32 %v395, 0.0
    %v537 = vmax.f32 %v398, 0.0
    %v538 = vmax.f32 %v401, 0.0
    %v539 = vmax.f32 %v404, 0.0
    %v540 = vmax.f32 %v407, 0.0
    %v541 = vmax.f32 %v410, 0.0
    %v542 = vmax.f32 %v413, 0.0
    %v543 = vmax.f32 %v416, 0.0
    %v544 = vmax.f32 %v419, 0.0
    %v545 = vmax.f32 %v422, 0.0
    %v546 = vmax.f32 %v425, 0.0
    %v547 = vmax.f32 %v428, 0.0
    %v548 = vmax.f32 %v431, 0.0
    %v549 = vmax.f32 %v434, 0.0
    %v550 = vmax.f32 %v437, 0.0
    %v551 = vmax.f32 %v440, 0.0
    %v552 = vmax.f32 %v443, 0.0
    %v553 = vmax.f32 %v446, 0.0
    %v554 = vmax.f32 %v449, 0.0
    %v555 = vmax.f32 %v452, 0.0
    %v556 = vmax.f32 %v455, 0.0
    %v557 = vmax.f32 %v458, 0.0
    %v558 = vmax.f32 %v461, 0.0
    %v559 = vmax.f32 %v464, 0.0
    %v560 = vmax.f32 %v467, 0.0
    %v561 = vmax.f32 %v470, 0.0
    %v562 = vmax.f32 %v473, 0.0
    %v563 = vmax.f32 %v476, 0.0
    %v564 = vmax.f32 %v479, 0.0
    %v565 = vmax.f32 %v482, 0.0
    %v566 = vmax.f32 %v485, 0.0
    %v567 = vmax.f32 %v488, 0.0
    %v568 = vmax.f32 %v491, 0.0
    %v569 = vmax.f32 %v494, 0.0
    %v570 = vmax.f32 %v497, 0.0
    %v571 = vmax.f32 %v500, 0.0
    %v572 = vmax.f32 %v503, 0.0
    %v573 = vmax.f32 %v506, 0.0
    %v574 = vmax.f32 %v509, 0.0
    %v575 = vmax.f32 %v511, %v513
    %v576 = vmax.f32 %v575, %v515
    %v577 = vmax.f32 %v576, %v517
    %v578 = vmax.f32 %v512, %v514
    %v579 = vmax.f32 %v578, %v516
    %v580 = vmax.f32 %v579, %v518
    %v581 = vmax.f32 %v519, %v521
    %v582 = vmax.f32 %v581, %v523
    %v583 = vmax.f32 %v582, %v525
    %v584 = vmax.f32 %v520, %v522
    %v585 = vmax.f32 %v584, %v524
    %v586 = vmax.f32 %v585, %v526
    %v587 = vmax.f32 %v527, %v529
    %v588 = vmax.f32 %v587, %v531
    %v589 = vmax.f32 %v588, %v533
    %v590 = vmax.f32 %v528, %v530
    %v591 = vmax.f32 %v590, %v532
    %v592 = vmax.f32 %v591, %v534
    %v593 = vmax.f32 %v535, %v537
    %v594 = vmax.f32 %v593, %v539
    %v595 = vmax.f32 %v594, %v541
    %v596 = vmax.f32 %v536, %v538
    %v597 = vmax.f32 %v596, %v540
    %v598 = vmax.f32 %v597, %v542
    %v599 = vmax.f32 %v543, %v545
    %v600 = vmax.f32 %v599, %v547
    %v601 = vmax.f32 %v600, %v549
    %v602 = vmax.f32 %v544, %v546
    %v603 = vmax.f32 %v602, %v548
    %v604 = vmax.f32 %v603, %v550
    %v605 = vmax.f32 %v551, %v553
    %v606 = vmax.f32 %v605, %v555
    %v607 = vmax.f32 %v606, %v557
    %v608 = vmax.f32 %v552, %v554
    %v609 = vmax.f32 %v608, %v556
    %v610 = vmax.f32 %v609, %v558
    %v611 = vmax.f32 %v559, %v561
    %v612 = vmax.f32 %v611, %v563
    %v613 = vmax.f32 %v612, %v565
    %v614 = vmax.f32 %v560, %v562
    %v615 = vmax.f32 %v614, %v564
    %v616 = vmax.f32 %v615, %v566
    %v617 = vmax.f32 %v567, %v569
    %v618 = vmax.f32 %v617, %v571
    %v619 = vmax.f32 %v618, %v573
    %v620 = vmax.f32 %v568, %v570
    %v621 = vmax.f32 %v620, %v572
    %v622 = vmax.f32 %v621, %v574
    %v639 = vrot.slane %v577, 4
    %v640 = vrot.slane %v580, 4
    %v641 = vrot.slane %v583, 4
    %v642 = vrot.slane %v586, 4
    %v643 = vrot.slane %v589, 4
    %v644 = vrot.slane %v592, 4
    %v645 = vrot.slane %v595, 4
    %v646 = vrot.slane %v598, 4
    %v647 = vrot.slane %v601, 4
    %v648 = vrot.slane %v604, 4
    %v649 = vrot.slane %v607, 4
    %v650 = vrot.slane %v610, 4
    %v651 = vrot.slane %v613, 4
    %v652 = vrot.slane %v616, 4
    %v653 = vrot.slane %v619, 4
    %v654 = vrot.slane %v622, 4
    %vm671 = vcmask 1043456
    %v672 = vsel %vm671, %v577, -inf
    %v673 = vrot.slane %v672, 4
    %v674 = vmax.f32 %v672, %v673
    %v675 = vrot.slane %v674, 2
    %v676 = vmax.f32 %v674, %v675
    %v677 = vrot.slane %v676, 1
    %v678 = vmax.f32 %v676, %v677
    %v679 = vsel %vm671, %v639, -inf
    %v680 = vrot.slane %v679, 4
    %v681 = vmax.f32 %v679, %v680
    %v682 = vrot.slane %v681, 2
    %v683 = vmax.f32 %v681, %v682
    %v684 = vrot.slane %v683, 1
    %v685 = vmax.f32 %v683, %v684
    %v686 = vsel %vm671, %v580, -inf
    %v687 = vrot.slane %v686, 4
    %v688 = vmax.f32 %v686, %v687
    %v689 = vrot.slane %v688, 2
    %v690 = vmax.f32 %v688, %v689
    %v691 = vrot.slane %v690, 1
    %v692 = vmax.f32 %v690, %v691
    %v693 = vsel %vm671, %v640, -inf
    %v694 = vrot.slane %v693, 4
    %v695 = vmax.f32 %v693, %v694
    %v696 = vrot.slane %v695, 2
    %v697 = vmax.f32 %v695, %v696
    %v698 = vrot.slane %v697, 1
    %v699 = vmax.f32 %v697, %v698
    %v700 = vsel %vm671, %v583, -inf
    %v701 = vrot.slane %v700, 4
    %v702 = vmax.f32 %v700, %v701
    %v703 = vrot.slane %v702, 2
    %v704 = vmax.f32 %v702, %v703
    %v705 = vrot.slane %v704, 1
    %v706 = vmax.f32 %v704, %v705
    %v707 = vsel %vm671, %v641, -inf
    %v708 = vrot.slane %v707, 4
    %v709 = vmax.f32 %v707, %v708
    %v710 = vrot.slane %v709, 2
    %v711 = vmax.f32 %v709, %v710
    %v712 = vrot.slane %v711, 1
    %v713 = vmax.f32 %v711, %v712
    %v714 = vsel %vm671, %v586, -inf
    %v715 = vrot.slane %v714, 4
    %v716 = vmax.f32 %v714, %v715
    %v717 = vrot.slane %v716, 2
    %v718 = vmax.f32 %v716, %v717
    %v719 = vrot.slane %v718, 1
    %v720 = vmax.f32 %v718, %v719
    %v721 = vsel %vm671, %v642, -inf
    %v722 = vrot.slane %v721, 4
    %v723 = vmax.f32 %v721, %v722
    %v724 = vrot.slane %v723, 2
    %v725 = vmax.f32 %v723, %v724
    %v726 = vrot.slane %v725, 1
    %v727 = vmax.f32 %v725, %v726
    %v728 = vsel %vm671, %v589, -inf
    %v729 = vrot.slane %v728, 4
    %v730 = vmax.f32 %v728, %v729
    %v731 = vrot.slane %v730, 2
    %v732 = vmax.f32 %v730, %v731
    %v733 = vrot.slane %v732, 1
    %v734 = vmax.f32 %v732, %v733
    %v735 = vsel %vm671, %v643, -inf
    %v736 = vrot.slane %v735, 4
    %v737 = vmax.f32 %v735, %v736
    %v738 = vrot.slane %v737, 2
    %v739 = vmax.f32 %v737, %v738
    %v740 = vrot.slane %v739, 1
    %v741 = vmax.f32 %v739, %v740
    %v742 = vsel %vm671, %v592, -inf
    %v743 = vrot.slane %v742, 4
    %v744 = vmax.f32 %v742, %v743
    %v745 = vrot.slane %v744, 2
    %v746 = vmax.f32 %v744, %v745
    %v747 = vrot.slane %v746, 1
    %v748 = vmax.f32 %v746, %v747
    %v749 = vsel %vm671, %v644, -inf
    %v750 = vrot.slane %v749, 4
    %v751 = vmax.f32 %v749, %v750
    %v752 = vrot.slane %v751, 2
    %v753 = vmax.f32 %v751, %v752
    %v754 = vrot.slane %v753, 1
    %v755 = vmax.f32 %v753, %v754
    %v756 = vsel %vm671, %v595, -inf
    %v757 = vrot.slane %v756, 4
    %v758 = vmax.f32 %v756, %v757
    %v759 = vrot.slane %v758, 2
    %v760 = vmax.f32 %v758, %v759
    %v761 = vrot.slane %v760, 1
    %v762 = vmax.f32 %v760, %v761
    %v763 = vsel %vm671, %v645, -inf
    %v764 = vrot.slane %v763, 4
    %v765 = vmax.f32 %v763, %v764
    %v766 = vrot.slane %v765, 2
    %v767 = vmax.f32 %v765, %v766
    %v768 = vrot.slane %v767, 1
    %v769 = vmax.f32 %v767, %v768
    %v770 = vsel %vm671, %v598, -inf
    %v771 = vrot.slane %v770, 4
    %v772 = vmax.f32 %v770, %v771
    %v773 = vrot.slane %v772, 2
    %v774 = vmax.f32 %v772, %v773
    %v775 = vrot.slane %v774, 1
    %v776 = vmax.f32 %v774, %v775
    %v777 = vsel %vm671, %v646, -inf
    %v778 = vrot.slane %v777, 4
    %v779 = vmax.f32 %v777, %v778
    %v780 = vrot.slane %v779, 2
    %v781 = vmax.f32 %v779, %v780
    %v782 = vrot.slane %v781, 1
    %v783 = vmax.f32 %v781, %v782
    %v784 = vsel %vm671, %v601, -inf
    %v785 = vrot.slane %v784, 4
    %v786 = vmax.f32 %v784, %v785
    %v787 = vrot.slane %v786, 2
    %v788 = vmax.f32 %v786, %v787
    %v789 = vrot.slane %v788, 1
    %v790 = vmax.f32 %v788, %v789
    %v791 = vsel %vm671, %v647, -inf
    %v792 = vrot.slane %v791, 4
    %v793 = vmax.f32 %v791, %v792
    %v794 = vrot.slane %v793, 2
    %v795 = vmax.f32 %v793, %v794
    %v796 = vrot.slane %v795, 1
    %v797 = vmax.f32 %v795, %v796
    %v798 = vsel %vm671, %v604, -inf
    %v799 = vrot.slane %v798, 4
    %v800 = vmax.f32 %v798, %v799
    %v801 = vrot.slane %v800, 2
    %v802 = vmax.f32 %v800, %v801
    %v803 = vrot.slane %v802, 1
    %v804 = vmax.f32 %v802, %v803
    %v805 = vsel %vm671, %v648, -inf
    %v806 = vrot.slane %v805, 4
    %v807 = vmax.f32 %v805, %v806
    %v808 = vrot.slane %v807, 2
    %v809 = vmax.f32 %v807, %v808
    %v810 = vrot.slane %v809, 1
    %v811 = vmax.f32 %v809, %v810
    %v812 = vsel %vm671, %v607, -inf
    %v813 = vrot.slane %v812, 4
    %v814 = vmax.f32 %v812, %v813
    %v815 = vrot.slane %v814, 2
    %v816 = vmax.f32 %v814, %v815
    %v817 = vrot.slane %v816, 1
    %v818 = vmax.f32 %v816, %v817
    %v819 = vsel %vm671, %v649, -inf
    %v820 = vrot.slane %v819, 4
    %v821 = vmax.f32 %v819, %v820
    %v822 = vrot.slane %v821, 2
    %v823 = vmax.f32 %v821, %v822
    %v824 = vrot.slane %v823, 1
    %v825 = vmax.f32 %v823, %v824
    %v826 = vsel %vm671, %v610, -inf
    %v827 = vrot.slane %v826, 4
    %v828 = vmax.f32 %v826, %v827
    %v829 = vrot.slane %v828, 2
    %v830 = vmax.f32 %v828, %v829
    %v831 = vrot.slane %v830, 1
    %v832 = vmax.f32 %v830, %v831
    %v833 = vsel %vm671, %v650, -inf
    %v834 = vrot.slane %v833, 4
    %v835 = vmax.f32 %v833, %v834
    %v836 = vrot.slane %v835, 2
    %v837 = vmax.f32 %v835, %v836
    %v838 = vrot.slane %v837, 1
    %v839 = vmax.f32 %v837, %v838
    %v840 = vsel %vm671, %v613, -inf
    %v841 = vrot.slane %v840, 4
    %v842 = vmax.f32 %v840, %v841
    %v843 = vrot.slane %v842, 2
    %v844 = vmax.f32 %v842, %v843
    %v845 = vrot.slane %v844, 1
    %v846 = vmax.f32 %v844, %v845
    %v847 = vsel %vm671, %v651, -inf
    %v848 = vrot.slane %v847, 4
    %v849 = vmax.f32 %v847, %v848
    %v850 = vrot.slane %v849, 2
    %v851 = vmax.f32 %v849, %v850
    %v852 = vrot.slane %v851, 1
    %v853 = vmax.f32 %v851, %v852
    %v854 = vsel %vm671, %v616, -inf
    %v855 = vrot.slane %v854, 4
    %v856 = vmax.f32 %v854, %v855
    %v857 = vrot.slane %v856, 2
    %v858 = vmax.f32 %v856, %v857
    %v859 = vrot.slane %v858, 1
    %v860 = vmax.f32 %v858, %v859
    %v861 = vsel %vm671, %v652, -inf
    %v862 = vrot.slane %v861, 4
    %v863 = vmax.f32 %v861, %v862
    %v864 = vrot.slane %v863, 2
    %v865 = vmax.f32 %v863, %v864
    %v866 = vrot.slane %v865, 1
    %v867 = vmax.f32 %v865, %v866
    %v868 = vsel %vm671, %v619, -inf
    %v869 = vrot.slane %v868, 4
    %v870 = vmax.f32 %v868, %v869
    %v871 = vrot.slane %v870, 2
    %v872 = vmax.f32 %v870, %v871
    %v873 = vrot.slane %v872, 1
    %v874 = vmax.f32 %v872, %v873
    %v875 = vsel %vm671, %v653, -inf
    %v876 = vrot.slane %v875, 4
    %v877 = vmax.f32 %v875, %v876
    %v878 = vrot.slane %v877, 2
    %v879 = vmax.f32 %v877, %v878
    %v880 = vrot.slane %v879, 1
    %v881 = vmax.f32 %v879, %v880
    %v882 = vsel %vm671, %v622, -inf
    %v883 = vrot.slane %v882, 4
    %v884 = vmax.f32 %v882, %v883
    %v885 = vrot.slane %v884, 2
    %v886 = vmax.f32 %v884, %v885
    %v887 = vrot.slane %v886, 1
    %v888 = vmax.f32 %v886, %v887
    %v889 = vsel %vm671, %v654, -inf
    %v890 = vrot.slane %v889, 4
    %v891 = vmax.f32 %v889, %v890
    %v892 = vrot.slane %v891, 2
    %v893 = vmax.f32 %v891, %v892
    %v894 = vrot.slane %v893, 1
    %v895 = vmax.f32 %v893, %v894
    %vm928 = vcmask 1041409
    %v929 = vsel %vm928, %v685, %v678
    %vm930 = vcmask 1042434
    %v931 = vsel %vm930, %v692, %v929
    %vm932 = vcmask 1043459
    %v933 = vsel %vm932, %v699, %v931
    %vm934 = vcmask 1044484
    %v935 = vsel %vm934, %v706, %v933
    %vm936 = vcmask 1045509
    %v937 = vsel %vm936, %v713, %v935
    %vm938 = vcmask 1046534
    %v939 = vsel %vm938, %v720, %v937
    %vm940 = vcmask 1047559
    %v941 = vsel %vm940, %v727, %v939
    %v942 = vsel %vm928, %v741, %v734
    %v943 = vsel %vm930, %v748, %v942
    %v944 = vsel %vm932, %v755, %v943
    %v945 = vsel %vm934, %v762, %v944
    %v946 = vsel %vm936, %v769, %v945
    %v947 = vsel %vm938, %v776, %v946
    %v948 = vsel %vm940, %v783, %v947
    %v949 = vsel %vm928, %v797, %v790
    %v950 = vsel %vm930, %v804, %v949
    %v951 = vsel %vm932, %v811, %v950
    %v952 = vsel %vm934, %v818, %v951
    %v953 = vsel %vm936, %v825, %v952
    %v954 = vsel %vm938, %v832, %v953
    %v955 = vsel %vm940, %v839, %v954
    %v956 = vsel %vm928, %v853, %v846
    %v957 = vsel %vm930, %v860, %v956
    %v958 = vsel %vm932, %v867, %v957
    %v959 = vsel %vm934, %v874, %v958
    %v960 = vsel %vm936, %v881, %v959
    %v961 = vsel %vm938, %v888, %v960
    %v962 = vsel %vm940, %v895, %v961
    %v963 = vld [vmem:[#allocation2] sm:$0xff]
    %v964 = vld [vmem:[#allocation2 + $0x8] sm:$0xff]
    %v965 = vld [vmem:[#allocation2 + $0x10] sm:$0xff]
    %v966 = vld [vmem:[#allocation2 + $0x18] sm:$0xff]
    %v967 = vld [vmem:[#allocation2 + $0x20] sm:$0xff]
    %v968 = vld [vmem:[#allocation2 + $0x28] sm:$0xff]
    %v969 = vld [vmem:[#allocation2 + $0x30] sm:$0xff]
    %v970 = vld [vmem:[#allocation2 + $0x38] sm:$0xff]
    %v971 = vld [vmem:[#allocation2 + $0x40] sm:$0xff]
    %v972 = vld [vmem:[#allocation2 + $0x48] sm:$0xff]
    %v973 = vld [vmem:[#allocation2 + $0x50] sm:$0xff]
    %v974 = vld [vmem:[#allocation2 + $0x58] sm:$0xff]
    %v975 = vld [vmem:[#allocation2 + $0x60] sm:$0xff]
    %v976 = vld [vmem:[#allocation2 + $0x68] sm:$0xff]
    %v977 = vld [vmem:[#allocation2 + $0x70] sm:$0xff]
    %v978 = vld [vmem:[#allocation2 + $0x78] sm:$0xff]
    %v979 = vld [vmem:[#allocation2 + $0x80] sm:$0xff]
    %v980 = vld [vmem:[#allocation2 + $0x88] sm:$0xff]
    %v981 = vld [vmem:[#allocation2 + $0x90] sm:$0xff]
    %v982 = vld [vmem:[#allocation2 + $0x98] sm:$0xff]
    %v983 = vld [vmem:[#allocation2 + $0xa0] sm:$0xff]
    %v984 = vld [vmem:[#allocation2 + $0xa8] sm:$0xff]
    %v985 = vld [vmem:[#allocation2 + $0xb0] sm:$0xff]
    %v986 = vld [vmem:[#allocation2 + $0xb8] sm:$0xff]
    %v987 = vld [vmem:[#allocation2 + $0xc0] sm:$0xff]
    %v988 = vld [vmem:[#allocation2 + $0xc8] sm:$0xff]
    %v989 = vld [vmem:[#allocation2 + $0xd0] sm:$0xff]
    %v990 = vld [vmem:[#allocation2 + $0xd8] sm:$0xff]
    %v991 = vld [vmem:[#allocation2 + $0xe0] sm:$0xff]
    %v992 = vld [vmem:[#allocation2 + $0xe8] sm:$0xff]
    %v993 = vld [vmem:[#allocation2 + $0xf0] sm:$0xff]
    %v994 = vld [vmem:[#allocation2 + $0xf8] sm:$0xff]
    %v995 = vld [vmem:[#allocation2 + $0x100] sm:$0xff]
    %v996 = vld [vmem:[#allocation2 + $0x108] sm:$0xff]
    %v997 = vld [vmem:[#allocation2 + $0x110] sm:$0xff]
    %v998 = vld [vmem:[#allocation2 + $0x118] sm:$0xff]
    %v999 = vld [vmem:[#allocation2 + $0x120] sm:$0xff]
    %v1000 = vld [vmem:[#allocation2 + $0x128] sm:$0xff]
    %v1001 = vld [vmem:[#allocation2 + $0x130] sm:$0xff]
    %v1002 = vld [vmem:[#allocation2 + $0x138] sm:$0xff]
    %v1003 = vld [vmem:[#allocation2 + $0x140] sm:$0xff]
    %v1004 = vld [vmem:[#allocation2 + $0x148] sm:$0xff]
    %v1005 = vld [vmem:[#allocation2 + $0x150] sm:$0xff]
    %v1006 = vld [vmem:[#allocation2 + $0x158] sm:$0xff]
    %v1007 = vld [vmem:[#allocation2 + $0x160] sm:$0xff]
    %v1008 = vld [vmem:[#allocation2 + $0x168] sm:$0xff]
    %v1009 = vld [vmem:[#allocation2 + $0x170] sm:$0xff]
    %v1010 = vld [vmem:[#allocation2 + $0x178] sm:$0xff]
    %v1011 = vld [vmem:[#allocation2 + $0x180] sm:$0xff]
    %v1012 = vld [vmem:[#allocation2 + $0x188] sm:$0xff]
    %v1013 = vld [vmem:[#allocation2 + $0x190] sm:$0xff]
    %v1014 = vld [vmem:[#allocation2 + $0x198] sm:$0xff]
    %v1015 = vld [vmem:[#allocation2 + $0x1a0] sm:$0xff]
    %v1016 = vld [vmem:[#allocation2 + $0x1a8] sm:$0xff]
    %v1017 = vld [vmem:[#allocation2 + $0x1b0] sm:$0xff]
    %v1018 = vld [vmem:[#allocation2 + $0x1b8] sm:$0xff]
    %v1019 = vld [vmem:[#allocation2 + $0x1c0] sm:$0xff]
    %v1020 = vld [vmem:[#allocation2 + $0x1c8] sm:$0xff]
    %v1021 = vld [vmem:[#allocation2 + $0x1d0] sm:$0xff]
    %v1022 = vld [vmem:[#allocation2 + $0x1d8] sm:$0xff]
    %v1023 = vld [vmem:[#allocation2 + $0x1e0] sm:$0xff]
    %v1024 = vld [vmem:[#allocation2 + $0x1e8] sm:$0xff]
    %v1025 = vld [vmem:[#allocation2 + $0x1f0] sm:$0xff]
    %v1026 = vld [vmem:[#allocation2 + $0x1f8] sm:$0xff]
    %v1027 = vld [vmem:[#allocation2 + $0x200] sm:$0xff]
    %v1028 = vld [vmem:[#allocation2 + $0x208] sm:$0xff]
    %v1029 = vld [vmem:[#allocation2 + $0x210] sm:$0xff]
    %v1030 = vld [vmem:[#allocation2 + $0x218] sm:$0xff]
    %v1031 = vld [vmem:[#allocation2 + $0x220] sm:$0xff]
    %v1032 = vld [vmem:[#allocation2 + $0x228] sm:$0xff]
    %v1033 = vld [vmem:[#allocation2 + $0x230] sm:$0xff]
    %v1034 = vld [vmem:[#allocation2 + $0x238] sm:$0xff]
    %v1035 = vld [vmem:[#allocation2 + $0x240] sm:$0xff]
    %v1036 = vld [vmem:[#allocation2 + $0x248] sm:$0xff]
    %v1037 = vld [vmem:[#allocation2 + $0x250] sm:$0xff]
    %v1038 = vld [vmem:[#allocation2 + $0x258] sm:$0xff]
    %v1039 = vld [vmem:[#allocation2 + $0x260] sm:$0xff]
    %v1040 = vld [vmem:[#allocation2 + $0x268] sm:$0xff]
    %v1041 = vld [vmem:[#allocation2 + $0x270] sm:$0xff]
    %v1042 = vld [vmem:[#allocation2 + $0x278] sm:$0xff]
    %v1043 = vld [vmem:[#allocation2 + $0x280] sm:$0xff]
    %v1044 = vld [vmem:[#allocation2 + $0x288] sm:$0xff]
    %v1045 = vld [vmem:[#allocation2 + $0x290] sm:$0xff]
    %v1046 = vld [vmem:[#allocation2 + $0x298] sm:$0xff]
    %v1047 = vld [vmem:[#allocation2 + $0x2a0] sm:$0xff]
    %v1048 = vld [vmem:[#allocation2 + $0x2a8] sm:$0xff]
    %v1049 = vld [vmem:[#allocation2 + $0x2b0] sm:$0xff]
    %v1050 = vld [vmem:[#allocation2 + $0x2b8] sm:$0xff]
    %v1051 = vld [vmem:[#allocation2 + $0x2c0] sm:$0xff]
    %v1052 = vld [vmem:[#allocation2 + $0x2c8] sm:$0xff]
    %v1053 = vld [vmem:[#allocation2 + $0x2d0] sm:$0xff]
    %v1054 = vld [vmem:[#allocation2 + $0x2d8] sm:$0xff]
    %v1055 = vld [vmem:[#allocation2 + $0x2e0] sm:$0xff]
    %v1056 = vld [vmem:[#allocation2 + $0x2e8] sm:$0xff]
    %v1057 = vld [vmem:[#allocation2 + $0x2f0] sm:$0xff]
    %v1058 = vld [vmem:[#allocation2 + $0x2f8] sm:$0xff]
    %v1059 = vld [vmem:[#allocation2 + $0x300] sm:$0xff]
    %v1060 = vld [vmem:[#allocation2 + $0x308] sm:$0xff]
    %v1061 = vld [vmem:[#allocation2 + $0x310] sm:$0xff]
    %v1062 = vld [vmem:[#allocation2 + $0x318] sm:$0xff]
    %v1063 = vld [vmem:[#allocation2 + $0x320] sm:$0xff]
    %v1064 = vld [vmem:[#allocation2 + $0x328] sm:$0xff]
    %v1065 = vld [vmem:[#allocation2 + $0x330] sm:$0xff]
    %v1066 = vld [vmem:[#allocation2 + $0x338] sm:$0xff]
    %v1067 = vld [vmem:[#allocation2 + $0x340] sm:$0xff]
    %v1068 = vld [vmem:[#allocation2 + $0x348] sm:$0xff]
    %v1069 = vld [vmem:[#allocation2 + $0x350] sm:$0xff]
    %v1070 = vld [vmem:[#allocation2 + $0x358] sm:$0xff]
    %v1071 = vld [vmem:[#allocation2 + $0x360] sm:$0xff]
    %v1072 = vld [vmem:[#allocation2 + $0x368] sm:$0xff]
    %v1073 = vld [vmem:[#allocation2 + $0x370] sm:$0xff]
    %v1074 = vld [vmem:[#allocation2 + $0x378] sm:$0xff]
    %v1075 = vld [vmem:[#allocation2 + $0x380] sm:$0xff]
    %v1076 = vld [vmem:[#allocation2 + $0x388] sm:$0xff]
    %v1077 = vld [vmem:[#allocation2 + $0x390] sm:$0xff]
    %v1078 = vld [vmem:[#allocation2 + $0x398] sm:$0xff]
    %v1079 = vld [vmem:[#allocation2 + $0x3a0] sm:$0xff]
    %v1080 = vld [vmem:[#allocation2 + $0x3a8] sm:$0xff]
    %v1081 = vld [vmem:[#allocation2 + $0x3b0] sm:$0xff]
    %v1082 = vld [vmem:[#allocation2 + $0x3b8] sm:$0xff]
    %v1083 = vld [vmem:[#allocation2 + $0x3c0] sm:$0xff]
    %v1084 = vld [vmem:[#allocation2 + $0x3c8] sm:$0xff]
    %v1085 = vld [vmem:[#allocation2 + $0x3d0] sm:$0xff]
    %v1086 = vld [vmem:[#allocation2 + $0x3d8] sm:$0xff]
    %v1087 = vld [vmem:[#allocation2 + $0x3e0] sm:$0xff]
    %v1088 = vld [vmem:[#allocation2 + $0x3e8] sm:$0xff]
    %v1089 = vld [vmem:[#allocation2 + $0x3f0] sm:$0xff]
    %v1090 = vld [vmem:[#allocation2 + $0x3f8] sm:$0xff]
    %v1091 = vld [vmem:[#allocation2 + $0x400] sm:$0xff]
    %v1092 = vld [vmem:[#allocation2 + $0x408] sm:$0xff]
    %v1093 = vld [vmem:[#allocation2 + $0x410] sm:$0xff]
    %v1094 = vld [vmem:[#allocation2 + $0x418] sm:$0xff]
    %v1095 = vld [vmem:[#allocation2 + $0x420] sm:$0xff]
    %v1096 = vld [vmem:[#allocation2 + $0x428] sm:$0xff]
    %v1097 = vld [vmem:[#allocation2 + $0x430] sm:$0xff]
    %v1098 = vld [vmem:[#allocation2 + $0x438] sm:$0xff]
    %v1099 = vld [vmem:[#allocation2 + $0x440] sm:$0xff]
    %v1100 = vld [vmem:[#allocation2 + $0x448] sm:$0xff]
    %v1101 = vld [vmem:[#allocation2 + $0x450] sm:$0xff]
    %v1102 = vld [vmem:[#allocation2 + $0x458] sm:$0xff]
    %v1103 = vld [vmem:[#allocation2 + $0x460] sm:$0xff]
    %v1104 = vld [vmem:[#allocation2 + $0x468] sm:$0xff]
    %v1105 = vld [vmem:[#allocation2 + $0x470] sm:$0xff]
    %v1106 = vld [vmem:[#allocation2 + $0x478] sm:$0xff]
    %v1107 = vld [vmem:[#allocation2 + $0x480] sm:$0xff]
    %v1108 = vld [vmem:[#allocation2 + $0x488] sm:$0xff]
    %v1109 = vld [vmem:[#allocation2 + $0x490] sm:$0xff]
    %v1110 = vld [vmem:[#allocation2 + $0x498] sm:$0xff]
    %v1111 = vld [vmem:[#allocation2 + $0x4a0] sm:$0xff]
    %v1112 = vld [vmem:[#allocation2 + $0x4a8] sm:$0xff]
    %v1113 = vld [vmem:[#allocation2 + $0x4b0] sm:$0xff]
    %v1114 = vld [vmem:[#allocation2 + $0x4b8] sm:$0xff]
    %v1115 = vld [vmem:[#allocation2 + $0x4c0] sm:$0xff]
    %v1116 = vld [vmem:[#allocation2 + $0x4c8] sm:$0xff]
    %v1117 = vld [vmem:[#allocation2 + $0x4d0] sm:$0xff]
    %v1118 = vld [vmem:[#allocation2 + $0x4d8] sm:$0xff]
    %v1119 = vld [vmem:[#allocation2 + $0x4e0] sm:$0xff]
    %v1120 = vld [vmem:[#allocation2 + $0x4e8] sm:$0xff]
    %v1121 = vld [vmem:[#allocation2 + $0x4f0] sm:$0xff]
    %v1122 = vld [vmem:[#allocation2 + $0x4f8] sm:$0xff]
    %v1123 = vld [vmem:[#allocation2 + $0x500] sm:$0xff]
    %v1124 = vld [vmem:[#allocation2 + $0x508] sm:$0xff]
    %v1125 = vld [vmem:[#allocation2 + $0x510] sm:$0xff]
    %v1126 = vld [vmem:[#allocation2 + $0x518] sm:$0xff]
    %v1127 = vld [vmem:[#allocation2 + $0x520] sm:$0xff]
    %v1128 = vld [vmem:[#allocation2 + $0x528] sm:$0xff]
    %v1129 = vld [vmem:[#allocation2 + $0x530] sm:$0xff]
    %v1130 = vld [vmem:[#allocation2 + $0x538] sm:$0xff]
    %v1131 = vld [vmem:[#allocation2 + $0x540] sm:$0xff]
    %v1132 = vld [vmem:[#allocation2 + $0x548] sm:$0xff]
    %v1133 = vld [vmem:[#allocation2 + $0x550] sm:$0xff]
    %v1134 = vld [vmem:[#allocation2 + $0x558] sm:$0xff]
    %v1135 = vld [vmem:[#allocation2 + $0x560] sm:$0xff]
    %v1136 = vld [vmem:[#allocation2 + $0x568] sm:$0xff]
    %v1137 = vld [vmem:[#allocation2 + $0x570] sm:$0xff]
    %v1138 = vld [vmem:[#allocation2 + $0x578] sm:$0xff]
    %v1139 = vld [vmem:[#allocation2 + $0x580] sm:$0xff]
    %v1140 = vld [vmem:[#allocation2 + $0x588] sm:$0xff]
    %v1141 = vld [vmem:[#allocation2 + $0x590] sm:$0xff]
    %v1142 = vld [vmem:[#allocation2 + $0x598] sm:$0xff]
    %v1143 = vld [vmem:[#allocation2 + $0x5a0] sm:$0xff]
    %v1144 = vld [vmem:[#allocation2 + $0x5a8] sm:$0xff]
    %v1145 = vld [vmem:[#allocation2 + $0x5b0] sm:$0xff]
    %v1146 = vld [vmem:[#allocation2 + $0x5b8] sm:$0xff]
    %v1147 = vld [vmem:[#allocation2 + $0x5c0] sm:$0xff]
    %v1148 = vld [vmem:[#allocation2 + $0x5c8] sm:$0xff]
    %v1149 = vld [vmem:[#allocation2 + $0x5d0] sm:$0xff]
    %v1150 = vld [vmem:[#allocation2 + $0x5d8] sm:$0xff]
    %v1151 = vld [vmem:[#allocation2 + $0x5e0] sm:$0xff]
    %v1152 = vld [vmem:[#allocation2 + $0x5e8] sm:$0xff]
    %v1153 = vld [vmem:[#allocation2 + $0x5f0] sm:$0xff]
    %v1154 = vld [vmem:[#allocation2 + $0x5f8] sm:$0xff]
    %v1155 = vld [vmem:[#allocation2 + $0x600] sm:$0xff]
    %v1156 = vld [vmem:[#allocation2 + $0x608] sm:$0xff]
    %v1157 = vld [vmem:[#allocation2 + $0x610] sm:$0xff]
    %v1158 = vld [vmem:[#allocation2 + $0x618] sm:$0xff]
    %v1159 = vld [vmem:[#allocation2 + $0x620] sm:$0xff]
    %v1160 = vld [vmem:[#allocation2 + $0x628] sm:$0xff]
    %v1161 = vld [vmem:[#allocation2 + $0x630] sm:$0xff]
    %v1162 = vld [vmem:[#allocation2 + $0x638] sm:$0xff]
    %v1163 = vld [vmem:[#allocation2 + $0x640] sm:$0xff]
    %v1164 = vld [vmem:[#allocation2 + $0x648] sm:$0xff]
    %v1165 = vld [vmem:[#allocation2 + $0x650] sm:$0xff]
    %v1166 = vld [vmem:[#allocation2 + $0x658] sm:$0xff]
    %v1167 = vld [vmem:[#allocation2 + $0x660] sm:$0xff]
    %v1168 = vld [vmem:[#allocation2 + $0x668] sm:$0xff]
    %v1169 = vld [vmem:[#allocation2 + $0x670] sm:$0xff]
    %v1170 = vld [vmem:[#allocation2 + $0x678] sm:$0xff]
    %v1171 = vld [vmem:[#allocation2 + $0x680] sm:$0xff]
    %v1172 = vld [vmem:[#allocation2 + $0x688] sm:$0xff]
    %v1173 = vld [vmem:[#allocation2 + $0x690] sm:$0xff]
    %v1174 = vld [vmem:[#allocation2 + $0x698] sm:$0xff]
    %v1175 = vld [vmem:[#allocation2 + $0x6a0] sm:$0xff]
    %v1176 = vld [vmem:[#allocation2 + $0x6a8] sm:$0xff]
    %v1177 = vld [vmem:[#allocation2 + $0x6b0] sm:$0xff]
    %v1178 = vld [vmem:[#allocation2 + $0x6b8] sm:$0xff]
    %v1179 = vld [vmem:[#allocation2 + $0x6c0] sm:$0xff]
    %v1180 = vld [vmem:[#allocation2 + $0x6c8] sm:$0xff]
    %v1181 = vld [vmem:[#allocation2 + $0x6d0] sm:$0xff]
    %v1182 = vld [vmem:[#allocation2 + $0x6d8] sm:$0xff]
    %v1183 = vld [vmem:[#allocation2 + $0x6e0] sm:$0xff]
    %v1184 = vld [vmem:[#allocation2 + $0x6e8] sm:$0xff]
    %v1185 = vld [vmem:[#allocation2 + $0x6f0] sm:$0xff]
    %v1186 = vld [vmem:[#allocation2 + $0x6f8] sm:$0xff]
    %v1187 = vld [vmem:[#allocation2 + $0x700] sm:$0xff]
    %v1188 = vld [vmem:[#allocation2 + $0x708] sm:$0xff]
    %v1189 = vld [vmem:[#allocation2 + $0x710] sm:$0xff]
    %v1190 = vld [vmem:[#allocation2 + $0x718] sm:$0xff]
    %v1191 = vld [vmem:[#allocation2 + $0x720] sm:$0xff]
    %v1192 = vld [vmem:[#allocation2 + $0x728] sm:$0xff]
    %v1193 = vld [vmem:[#allocation2 + $0x730] sm:$0xff]
    %v1194 = vld [vmem:[#allocation2 + $0x738] sm:$0xff]
    %v1195 = vld [vmem:[#allocation2 + $0x740] sm:$0xff]
    %v1196 = vld [vmem:[#allocation2 + $0x748] sm:$0xff]
    %v1197 = vld [vmem:[#allocation2 + $0x750] sm:$0xff]
    %v1198 = vld [vmem:[#allocation2 + $0x758] sm:$0xff]
    %v1199 = vld [vmem:[#allocation2 + $0x760] sm:$0xff]
    %v1200 = vld [vmem:[#allocation2 + $0x768] sm:$0xff]
    %v1201 = vld [vmem:[#allocation2 + $0x770] sm:$0xff]
    %v1202 = vld [vmem:[#allocation2 + $0x778] sm:$0xff]
    %v1203 = vld [vmem:[#allocation2 + $0x780] sm:$0xff]
    %v1204 = vld [vmem:[#allocation2 + $0x788] sm:$0xff]
    %v1205 = vld [vmem:[#allocation2 + $0x790] sm:$0xff]
    %v1206 = vld [vmem:[#allocation2 + $0x798] sm:$0xff]
    %v1207 = vld [vmem:[#allocation2 + $0x7a0] sm:$0xff]
    %v1208 = vld [vmem:[#allocation2 + $0x7a8] sm:$0xff]
    %v1209 = vld [vmem:[#allocation2 + $0x7b0] sm:$0xff]
    %v1210 = vld [vmem:[#allocation2 + $0x7b8] sm:$0xff]
    %v1211 = vld [vmem:[#allocation2 + $0x7c0] sm:$0xff]
    %v1212 = vld [vmem:[#allocation2 + $0x7c8] sm:$0xff]
    %v1213 = vld [vmem:[#allocation2 + $0x7d0] sm:$0xff]
    %v1214 = vld [vmem:[#allocation2 + $0x7d8] sm:$0xff]
    %v1215 = vld [vmem:[#allocation2 + $0x7e0] sm:$0xff]
    %v1216 = vld [vmem:[#allocation2 + $0x7e8] sm:$0xff]
    %v1217 = vld [vmem:[#allocation2 + $0x7f0] sm:$0xff]
    %v1218 = vld [vmem:[#allocation2 + $0x7f8] sm:$0xff]
    %v1219 = vld [vmem:[%s4] sm:$0x1]
    %v1221 = vperm.slane %v1219, 0
    %1223 = vst [vmem:[#allocation1] ss:$9 sm:$0xff] %v941
    %s1224 = scalar_lea.vmem [#allocation1], 1
    %1225 = vst [vmem:[%s1224] ss:$9 sm:$0xff] %v955
    %v1226 = vld [vmem:[#allocation1] sm:$0xff]
    %v1227 = vld [vmem:[#allocation1 + $0x9] sm:$0xff]
    %v1228 = vld [vmem:[#allocation1 + $0x12] sm:$0xff]
    %v1229 = vld [vmem:[#allocation1 + $0x1b] sm:$0xff]
    %v1230 = vld [vmem:[#allocation1 + $0x24] sm:$0xff]
    %v1231 = vld [vmem:[#allocation1 + $0x2d] sm:$0xff]
    %v1232 = vld [vmem:[#allocation1 + $0x36] sm:$0xff]
    %v1233 = vld [vmem:[#allocation1 + $0x3f] sm:$0xff]
    %1234 = vst [vmem:[#allocation1] ss:$9 sm:$0xff] %v948
    %1235 = vst [vmem:[%s1224] ss:$9 sm:$0xff] %v962
    %v1236 = vld [vmem:[#allocation1] sm:$0xff]
    %v1237 = vld [vmem:[#allocation1 + $0x9] sm:$0xff]
    %v1238 = vld [vmem:[#allocation1 + $0x12] sm:$0xff]
    %v1239 = vld [vmem:[#allocation1 + $0x1b] sm:$0xff]
    %v1240 = vld [vmem:[#allocation1 + $0x24] sm:$0xff]
    %v1241 = vld [vmem:[#allocation1 + $0x2d] sm:$0xff]
    %v1242 = vld [vmem:[#allocation1 + $0x36] sm:$0xff]
    %v1243 = vld [vmem:[#allocation1 + $0x3f] sm:$0xff]
    %1260 = vmatpush.msra.mxu0 %v978
    %1261 = vmatpush.msra.mxu0 %v977
    %1262 = vmatpush.msra.mxu0 %v976
    %1263 = vmatpush.msra.mxu0 %v975
    %1264 = vmatpush.msra.mxu0 %v974
    %1265 = vmatpush.msra.mxu0 %v973
    %1266 = vmatpush.msra.mxu0 %v972
    %1267 = vmatpush.msra.mxu0 %v971
    %1268 = vmatpush.msra.mxu0 %v970
    %1269 = vmatpush.msra.mxu0 %v969
    %1270 = vmatpush.msra.mxu0 %v968
    %1271 = vmatpush.msra.mxu0 %v967
    %1272 = vmatpush.msra.mxu0 %v966
    %1273 = vmatpush.msra.mxu0 %v965
    %1274 = vmatpush.msra.mxu0 %v964
    %1275 = vmatpush.msra.mxu0 %v963
    %1276 = vmatmul.f32.gmra.mxu0 %v1226
    %v1277 = vpop.f32.mrf.mxu0
    %v1278 = vadd.f32 %v1221, %v1277
    %1279 = vdwg.mxu0
    %1280 = vmatpush.msra.mxu0 %v994
    %1281 = vmatpush.msra.mxu0 %v993
    %1282 = vmatpush.msra.mxu0 %v992
    %1283 = vmatpush.msra.mxu0 %v991
    %1284 = vmatpush.msra.mxu0 %v990
    %1285 = vmatpush.msra.mxu0 %v989
    %1286 = vmatpush.msra.mxu0 %v988
    %1287 = vmatpush.msra.mxu0 %v987
    %1288 = vmatpush.msra.mxu0 %v986
    %1289 = vmatpush.msra.mxu0 %v985
    %1290 = vmatpush.msra.mxu0 %v984
    %1291 = vmatpush.msra.mxu0 %v983
    %1292 = vmatpush.msra.mxu0 %v982
    %1293 = vmatpush.msra.mxu0 %v981
    %1294 = vmatpush.msra.mxu0 %v980
    %1295 = vmatpush.msra.mxu0 %v979
    %1296 = vmatmul.f32.gmra.mxu0 %v1227
    %v1297 = vpop.f32.mrf.mxu0
    %v1298 = vadd.f32 %v1278, %v1297
    %1299 = vdwg.mxu0
    %1300 = vmatpush.msra.mxu0 %v1010
    %1301 = vmatpush.msra.mxu0 %v1009
    %1302 = vmatpush.msra.mxu0 %v1008
    %1303 = vmatpush.msra.mxu0 %v1007
    %1304 = vmatpush.msra.mxu0 %v1006
    %1305 = vmatpush.msra.mxu0 %v1005
    %1306 = vmatpush.msra.mxu0 %v1004
    %1307 = vmatpush.msra.mxu0 %v1003
    %1308 = vmatpush.msra.mxu0 %v1002
    %1309 = vmatpush.msra.mxu0 %v1001
    %1310 = vmatpush.msra.mxu0 %v1000
    %1311 = vmatpush.msra.mxu0 %v999
    %1312 = vmatpush.msra.mxu0 %v998
    %1313 = vmatpush.msra.mxu0 %v997
    %1314 = vmatpush.msra.mxu0 %v996
    %1315 = vmatpush.msra.mxu0 %v995
    %1316 = vmatmul.f32.gmra.mxu0 %v1228
    %v1317 = vpop.f32.mrf.mxu0
    %v1318 = vadd.f32 %v1298, %v1317
    %1319 = vdwg.mxu0
    %1320 = vmatpush.msra.mxu0 %v1026
    %1321 = vmatpush.msra.mxu0 %v1025
    %1322 = vmatpush.msra.mxu0 %v1024
    %1323 = vmatpush.msra.mxu0 %v1023
    %1324 = vmatpush.msra.mxu0 %v1022
    %1325 = vmatpush.msra.mxu0 %v1021
    %1326 = vmatpush.msra.mxu0 %v1020
    %1327 = vmatpush.msra.mxu0 %v1019
    %1328 = vmatpush.msra.mxu0 %v1018
    %1329 = vmatpush.msra.mxu0 %v1017
    %1330 = vmatpush.msra.mxu0 %v1016
    %1331 = vmatpush.msra.mxu0 %v1015
    %1332 = vmatpush.msra.mxu0 %v1014
    %1333 = vmatpush.msra.mxu0 %v1013
    %1334 = vmatpush.msra.mxu0 %v1012
    %1335 = vmatpush.msra.mxu0 %v1011
    %1336 = vmatmul.f32.gmra.mxu0 %v1229
    %v1337 = vpop.f32.mrf.mxu0
    %v1338 = vadd.f32 %v1318, %v1337
    %1339 = vdwg.mxu0
    %1340 = vmatpush.msra.mxu0 %v1042
    %1341 = vmatpush.msra.mxu0 %v1041
    %1342 = vmatpush.msra.mxu0 %v1040
    %1343 = vmatpush.msra.mxu0 %v1039
    %1344 = vmatpush.msra.mxu0 %v1038
    %1345 = vmatpush.msra.mxu0 %v1037
    %1346 = vmatpush.msra.mxu0 %v1036
    %1347 = vmatpush.msra.mxu0 %v1035
    %1348 = vmatpush.msra.mxu0 %v1034
    %1349 = vmatpush.msra.mxu0 %v1033
    %1350 = vmatpush.msra.mxu0 %v1032
    %1351 = vmatpush.msra.mxu0 %v1031
    %1352 = vmatpush.msra.mxu0 %v1030
    %1353 = vmatpush.msra.mxu0 %v1029
    %1354 = vmatpush.msra.mxu0 %v1028
    %1355 = vmatpush.msra.mxu0 %v1027
    %1356 = vmatmul.f32.gmra.mxu0 %v1230
    %v1357 = vpop.f32.mrf.mxu0
    %v1358 = vadd.f32 %v1338, %v1357
    %1359 = vdwg.mxu0
    %1360 = vmatpush.msra.mxu0 %v1058
    %1361 = vmatpush.msra.mxu0 %v1057
    %1362 = vmatpush.msra.mxu0 %v1056
    %1363 = vmatpush.msra.mxu0 %v1055
    %1364 = vmatpush.msra.mxu0 %v1054
    %1365 = vmatpush.msra.mxu0 %v1053
    %1366 = vmatpush.msra.mxu0 %v1052
    %1367 = vmatpush.msra.mxu0 %v1051
    %1368 = vmatpush.msra.mxu0 %v1050
    %1369 = vmatpush.msra.mxu0 %v1049
    %1370 = vmatpush.msra.mxu0 %v1048
    %1371 = vmatpush.msra.mxu0 %v1047
    %1372 = vmatpush.msra.mxu0 %v1046
    %1373 = vmatpush.msra.mxu0 %v1045
    %1374 = vmatpush.msra.mxu0 %v1044
    %1375 = vmatpush.msra.mxu0 %v1043
    %1376 = vmatmul.f32.gmra.mxu0 %v1231
    %v1377 = vpop.f32.mrf.mxu0
    %v1378 = vadd.f32 %v1358, %v1377
    %1379 = vdwg.mxu0
    %1380 = vmatpush.msra.mxu0 %v1074
    %1381 = vmatpush.msra.mxu0 %v1073
    %1382 = vmatpush.msra.mxu0 %v1072
    %1383 = vmatpush.msra.mxu0 %v1071
    %1384 = vmatpush.msra.mxu0 %v1070
    %1385 = vmatpush.msra.mxu0 %v1069
    %1386 = vmatpush.msra.mxu0 %v1068
    %1387 = vmatpush.msra.mxu0 %v1067
    %1388 = vmatpush.msra.mxu0 %v1066
    %1389 = vmatpush.msra.mxu0 %v1065
    %1390 = vmatpush.msra.mxu0 %v1064
    %1391 = vmatpush.msra.mxu0 %v1063
    %1392 = vmatpush.msra.mxu0 %v1062
    %1393 = vmatpush.msra.mxu0 %v1061
    %1394 = vmatpush.msra.mxu0 %v1060
    %1395 = vmatpush.msra.mxu0 %v1059
    %1396 = vmatmul.f32.gmra.mxu0 %v1232
    %v1397 = vpop.f32.mrf.mxu0
    %v1398 = vadd.f32 %v1378, %v1397
    %1399 = vdwg.mxu0
    %1400 = vmatpush.msra.mxu0 %v1090
    %1401 = vmatpush.msra.mxu0 %v1089
    %1402 = vmatpush.msra.mxu0 %v1088
    %1403 = vmatpush.msra.mxu0 %v1087
    %1404 = vmatpush.msra.mxu0 %v1086
    %1405 = vmatpush.msra.mxu0 %v1085
    %1406 = vmatpush.msra.mxu0 %v1084
    %1407 = vmatpush.msra.mxu0 %v1083
    %1408 = vmatpush.msra.mxu0 %v1082
    %1409 = vmatpush.msra.mxu0 %v1081
    %1410 = vmatpush.msra.mxu0 %v1080
    %1411 = vmatpush.msra.mxu0 %v1079
    %1412 = vmatpush.msra.mxu0 %v1078
    %1413 = vmatpush.msra.mxu0 %v1077
    %1414 = vmatpush.msra.mxu0 %v1076
    %1415 = vmatpush.msra.mxu0 %v1075
    %1416 = vmatmul.f32.gmra.mxu0 %v1233
    %v1417 = vpop.f32.mrf.mxu0
    %v1418 = vadd.f32 %v1398, %v1417
    %1419 = vdwg.mxu0
    %1420 = vmatpush.msra.mxu0 %v1106
    %1421 = vmatpush.msra.mxu0 %v1105
    %1422 = vmatpush.msra.mxu0 %v1104
    %1423 = vmatpush.msra.mxu0 %v1103
    %1424 = vmatpush.msra.mxu0 %v1102
    %1425 = vmatpush.msra.mxu0 %v1101
    %1426 = vmatpush.msra.mxu0 %v1100
    %1427 = vmatpush.msra.mxu0 %v1099
    %1428 = vmatpush.msra.mxu0 %v1098
    %1429 = vmatpush.msra.mxu0 %v1097
    %1430 = vmatpush.msra.mxu0 %v1096
    %1431 = vmatpush.msra.mxu0 %v1095
    %1432 = vmatpush.msra.mxu0 %v1094
    %1433 = vmatpush.msra.mxu0 %v1093
    %1434 = vmatpush.msra.mxu0 %v1092
    %1435 = vmatpush.msra.mxu0 %v1091
    %1436 = vmatmul.f32.gmra.mxu0 %v1236
    %v1437 = vpop.f32.mrf.mxu0
    %v1438 = vadd.f32 %v1418, %v1437
    %1439 = vdwg.mxu0
    %1440 = vmatpush.msra.mxu0 %v1122
    %1441 = vmatpush.msra.mxu0 %v1121
    %1442 = vmatpush.msra.mxu0 %v1120
    %1443 = vmatpush.msra.mxu0 %v1119
    %1444 = vmatpush.msra.mxu0 %v1118
    %1445 = vmatpush.msra.mxu0 %v1117
    %1446 = vmatpush.msra.mxu0 %v1116
    %1447 = vmatpush.msra.mxu0 %v1115
    %1448 = vmatpush.msra.mxu0 %v1114
    %1449 = vmatpush.msra.mxu0 %v1113
    %1450 = vmatpush.msra.mxu0 %v1112
    %1451 = vmatpush.msra.mxu0 %v1111
    %1452 = vmatpush.msra.mxu0 %v1110
    %1453 = vmatpush.msra.mxu0 %v1109
    %1454 = vmatpush.msra.mxu0 %v1108
    %1455 = vmatpush.msra.mxu0 %v1107
    %1456 = vmatmul.f32.gmra.mxu0 %v1237
    %v1457 = vpop.f32.mrf.mxu0
    %v1458 = vadd.f32 %v1438, %v1457
    %1459 = vdwg.mxu0
    %1460 = vmatpush.msra.mxu0 %v1138
    %1461 = vmatpush.msra.mxu0 %v1137
    %1462 = vmatpush.msra.mxu0 %v1136
    %1463 = vmatpush.msra.mxu0 %v1135
    %1464 = vmatpush.msra.mxu0 %v1134
    %1465 = vmatpush.msra.mxu0 %v1133
    %1466 = vmatpush.msra.mxu0 %v1132
    %1467 = vmatpush.msra.mxu0 %v1131
    %1468 = vmatpush.msra.mxu0 %v1130
    %1469 = vmatpush.msra.mxu0 %v1129
    %1470 = vmatpush.msra.mxu0 %v1128
    %1471 = vmatpush.msra.mxu0 %v1127
    %1472 = vmatpush.msra.mxu0 %v1126
    %1473 = vmatpush.msra.mxu0 %v1125
    %1474 = vmatpush.msra.mxu0 %v1124
    %1475 = vmatpush.msra.mxu0 %v1123
    %1476 = vmatmul.f32.gmra.mxu0 %v1238
    %v1477 = vpop.f32.mrf.mxu0
    %v1478 = vadd.f32 %v1458, %v1477
    %1479 = vdwg.mxu0
    %1480 = vmatpush.msra.mxu0 %v1154
    %1481 = vmatpush.msra.mxu0 %v1153
    %1482 = vmatpush.msra.mxu0 %v1152
    %1483 = vmatpush.msra.mxu0 %v1151
    %1484 = vmatpush.msra.mxu0 %v1150
    %1485 = vmatpush.msra.mxu0 %v1149
    %1486 = vmatpush.msra.mxu0 %v1148
    %1487 = vmatpush.msra.mxu0 %v1147
    %1488 = vmatpush.msra.mxu0 %v1146
    %1489 = vmatpush.msra.mxu0 %v1145
    %1490 = vmatpush.msra.mxu0 %v1144
    %1491 = vmatpush.msra.mxu0 %v1143
    %1492 = vmatpush.msra.mxu0 %v1142
    %1493 = vmatpush.msra.mxu0 %v1141
    %1494 = vmatpush.msra.mxu0 %v1140
    %1495 = vmatpush.msra.mxu0 %v1139
    %1496 = vmatmul.f32.gmra.mxu0 %v1239
    %v1497 = vpop.f32.mrf.mxu0
    %v1498 = vadd.f32 %v1478, %v1497
    %1499 = vdwg.mxu0
    %1500 = vmatpush.msra.mxu0 %v1170
    %1501 = vmatpush.msra.mxu0 %v1169
    %1502 = vmatpush.msra.mxu0 %v1168
    %1503 = vmatpush.msra.mxu0 %v1167
    %1504 = vmatpush.msra.mxu0 %v1166
    %1505 = vmatpush.msra.mxu0 %v1165
    %1506 = vmatpush.msra.mxu0 %v1164
    %1507 = vmatpush.msra.mxu0 %v1163
    %1508 = vmatpush.msra.mxu0 %v1162
    %1509 = vmatpush.msra.mxu0 %v1161
    %1510 = vmatpush.msra.mxu0 %v1160
    %1511 = vmatpush.msra.mxu0 %v1159
    %1512 = vmatpush.msra.mxu0 %v1158
    %1513 = vmatpush.msra.mxu0 %v1157
    %1514 = vmatpush.msra.mxu0 %v1156
    %1515 = vmatpush.msra.mxu0 %v1155
    %1516 = vmatmul.f32.gmra.mxu0 %v1240
    %v1517 = vpop.f32.mrf.mxu0
    %v1518 = vadd.f32 %v1498, %v1517
    %1519 = vdwg.mxu0
    %1520 = vmatpush.msra.mxu0 %v1186
    %1521 = vmatpush.msra.mxu0 %v1185
    %1522 = vmatpush.msra.mxu0 %v1184
    %1523 = vmatpush.msra.mxu0 %v1183
    %1524 = vmatpush.msra.mxu0 %v1182
    %1525 = vmatpush.msra.mxu0 %v1181
    %1526 = vmatpush.msra.mxu0 %v1180
    %1527 = vmatpush.msra.mxu0 %v1179
    %1528 = vmatpush.msra.mxu0 %v1178
    %1529 = vmatpush.msra.mxu0 %v1177
    %1530 = vmatpush.msra.mxu0 %v1176
    %1531 = vmatpush.msra.mxu0 %v1175
    %1532 = vmatpush.msra.mxu0 %v1174
    %1533 = vmatpush.msra.mxu0 %v1173
    %1534 = vmatpush.msra.mxu0 %v1172
    %1535 = vmatpush.msra.mxu0 %v1171
    %1536 = vmatmul.f32.gmra.mxu0 %v1241
    %v1537 = vpop.f32.mrf.mxu0
    %v1538 = vadd.f32 %v1518, %v1537
    %1539 = vdwg.mxu0
    %1540 = vmatpush.msra.mxu0 %v1202
    %1541 = vmatpush.msra.mxu0 %v1201
    %1542 = vmatpush.msra.mxu0 %v1200
    %1543 = vmatpush.msra.mxu0 %v1199
    %1544 = vmatpush.msra.mxu0 %v1198
    %1545 = vmatpush.msra.mxu0 %v1197
    %1546 = vmatpush.msra.mxu0 %v1196
    %1547 = vmatpush.msra.mxu0 %v1195
    %1548 = vmatpush.msra.mxu0 %v1194
    %1549 = vmatpush.msra.mxu0 %v1193
    %1550 = vmatpush.msra.mxu0 %v1192
    %1551 = vmatpush.msra.mxu0 %v1191
    %1552 = vmatpush.msra.mxu0 %v1190
    %1553 = vmatpush.msra.mxu0 %v1189
    %1554 = vmatpush.msra.mxu0 %v1188
    %1555 = vmatpush.msra.mxu0 %v1187
    %1556 = vmatmul.f32.gmra.mxu0 %v1242
    %v1557 = vpop.f32.mrf.mxu0
    %v1558 = vadd.f32 %v1538, %v1557
    %1559 = vdwg.mxu0
    %1560 = vmatpush.msra.mxu0 %v1218
    %1561 = vmatpush.msra.mxu0 %v1217
    %1562 = vmatpush.msra.mxu0 %v1216
    %1563 = vmatpush.msra.mxu0 %v1215
    %1564 = vmatpush.msra.mxu0 %v1214
    %1565 = vmatpush.msra.mxu0 %v1213
    %1566 = vmatpush.msra.mxu0 %v1212
    %1567 = vmatpush.msra.mxu0 %v1211
    %1568 = vmatpush.msra.mxu0 %v1210
    %1569 = vmatpush.msra.mxu0 %v1209
    %1570 = vmatpush.msra.mxu0 %v1208
    %1571 = vmatpush.msra.mxu0 %v1207
    %1572 = vmatpush.msra.mxu0 %v1206
    %1573 = vmatpush.msra.mxu0 %v1205
    %1574 = vmatpush.msra.mxu0 %v1204
    %1575 = vmatpush.msra.mxu0 %v1203
    %1576 = vmatmul.f32.gmra.mxu0 %v1243
    %v1577 = vpop.f32.mrf.mxu0
    %v1578 = vadd.f32 %v1558, %v1577
    %1579 = vdwg.mxu0
    %1580 = vst [vmem:[#allocation5] sm:$0x3] %v1578
    // Predicated region
    $region26: #{tpu_custom_call.1} parent=1 // pred_check
      _
    $region27: #{tpu_custom_call.1} parent=1 // pred_check_branch
      %1582 = sbr.rel (0) target = $region29
    $region28: #{tpu_custom_call.1} parent=1 // pred_region
      %1584 = vsyncadd [#allocation4], 0
      %s1586 = sshll.u32 [#allocation5], 4
      %s1587 = int_to_ptr.vmem [resolvable:$true] %s1586
      %s1588 = sshll.u32 %s5, 4
      %s1589 = int_to_ptr.hbm [resolvable:$true] %s1588
      %1591 = dma.vmem_to_hbm [thread:$0]  %s1587, 32, %s1589, [#allocation4]
    $region29: #{tpu_custom_call.1} parent=1 // pred_fallthru
      _
    // Predicated region
    $region30: #{tpu_custom_call.1} parent=1 // pred_check
      _
    $region31: #{tpu_custom_call.1} parent=1 // pred_check_branch
      %1593 = sbr.rel (0) target = $region33
    $region32: #{tpu_custom_call.1} parent=1 // pred_region
      %1595 = dma.done [#allocation4], 32
    $region33: #{tpu_custom_call.1} parent=1 // pred_fallthru
      _
    %1596 = vsyncpa [#allocation3], 1
    %1597 = vsyncpa [#allocation4], 1

</llo_original>
